<compile_context>
chip_gen: v5e
topology: v5e:2x2
jax: 0.10.0
libtpu: 0.0.40
codegen_flags: <defaults>
</compile_context>

<pallas_src>
import jax
import jax.numpy as jnp
import numpy as np
from jax.experimental import pallas as pl
from jax.experimental.pallas import tpu as pltpu


def _round_up(x: int, m: int) -> int:
    return (x + m - 1) // m * m


# ---------------------------------------------------------------------------
# Pallas kernel: tanh-MLP + softmax head for one batch tile
# ---------------------------------------------------------------------------
def _nnlm_kernel(x_ref, wh_ref, bh_ref, wu_ref, bu_ref, out_ref):
    # x_ref : (tm, d_in)          bf16  concatenated embeddings
    # wh_ref: (d_in, hidden_pad)  bf16  H weight (pre-transposed, N-padded)
    # bh_ref: (1, hidden_pad)     f32   H bias (zero-padded)
    # wu_ref: (hidden_pad, vocab) bf16  U weight (pre-transposed, K-padded)
    # bu_ref: (1, vocab)          f32   U bias
    # out_ref: (tm, vocab)              softmax probabilities

    # Hidden layer: bf16 MXU matmul with f32 accumulation, f32 bias + tanh (EUP).
    h = jnp.dot(x_ref[...], wh_ref[...], preferred_element_type=jnp.float32)
    h = jnp.tanh(h + bh_ref[...])

    # Output layer: cast activations to bf16 for the MXU, accumulate in f32.
    logits = (
        jnp.dot(h.astype(jnp.bfloat16), wu_ref[...],
                preferred_element_type=jnp.float32)
        + bu_ref[...]
    )

    # Numerically stable softmax over the vocab (last) axis == torch Softmax(dim=1).
    # max/sum go to the XLU, exp to the EUP; the only serialized VPU work is the
    # subtract and the single fused scale-and-cast pass below.
    # TODO(synk): for realistic vocab sizes (>~2k), add a second ("arbitrary", last)
    # grid axis over vocab tiles of W_U/b_u/out with a two-pass softmax.
    m = jnp.max(logits, axis=-1, keepdims=True)
    e = jnp.exp(logits - m)
    denom = jnp.sum(e, axis=-1, keepdims=True)
    # Exact reciprocal on the (tm, 1) denominator: negligible cost, keeps row sums
    # at 1.0 to f32 precision (approx rcp + one Newton step was ~1e-5 off).
    inv = pl.reciprocal(denom, approx=False)
    out_ref[...] = (e * inv).astype(out_ref.dtype)


def _resident_spec(block_shape, index_map):
    """Weight/bias BlockSpec: constant index_map, single-buffered (never re-fetched)."""
    try:
        return pl.BlockSpec(block_shape, index_map, pipeline_mode=pl.Buffered(1))
    except (AttributeError, TypeError):
        # Older jax without BlockSpec.pipeline_mode: fall back to default buffering.
        return pl.BlockSpec(block_shape, index_map)


# ---------------------------------------------------------------------------
# One-time parameter preparation (hoisted out of the per-forward path)
# ---------------------------------------------------------------------------
def prepare_params(emb_table, w_h, b_h, w_u, b_u, ctx):
    """Pre-transpose, pad and cast weights once (PyTorch Linear stores (out, in)).

    `hidden` is padded to a multiple of 128 so matmul-1's N dim and matmul-2's K dim
    are lane-aligned. Padded W_H columns / b_h entries are zero -> tanh(0) = 0, and
    the matching zero W_U rows contribute nothing, so the math is unchanged.
    """
    V, F = emb_table.shape
    hidden = w_h.shape[0]
    d_in = ctx * F
    hidden_pad = _round_up(hidden, 128)

    wh_t = jnp.zeros((d_in, hidden_pad), jnp.bfloat16)
    wh_t = wh_t.at[:, :hidden].set(jnp.transpose(w_h).astype(jnp.bfloat16))
    wu_t = jnp.zeros((hidden_pad, V), jnp.bfloat16)
    wu_t = wu_t.at[:hidden, :].set(jnp.transpose(w_u).astype(jnp.bfloat16))
    bh2 = jnp.zeros((1, hidden_pad), jnp.float32)
    bh2 = bh2.at[:, :hidden].set(b_h.reshape(1, hidden).astype(jnp.float32))
    bu2 = b_u.reshape(1, V).astype(jnp.float32)
    emb_bf16 = emb_table.astype(jnp.bfloat16)

    return dict(emb=emb_bf16, wh=wh_t, bh=bh2, wu=wu_t, bu=bu2,
                feature=F, d_in=d_in, hidden=hidden, hidden_pad=hidden_pad, vocab=V)


# ---------------------------------------------------------------------------
# Forward pass
# ---------------------------------------------------------------------------
def nnlm_forward(xs, params, *, tile_m=None, out_dtype=jnp.float32):
    """Full NNLM forward. xs: (B, n-1) int32 token ids."""
    B, ctx = xs.shape
    d_in = params["d_in"]
    hidden_pad, V = params["hidden_pad"], params["vocab"]

    # Batch tile: large enough to fill the MXU M dim and amortize per-grid-step
    # overhead, but small enough that the batch grid has >= 2 steps (so the
    # "parallel" axis actually spans both v7x TensorCores). Raise to 256-512 on
    # v6e for very large batches.
    if tile_m is None:
        tile_m = 256 if B > 256 else 128
    B_pad = _round_up(B, tile_m)

    # Pad the *index* array (tiny) instead of the activations: the gather below then
    # directly produces a (B_pad, d_in) bf16 buffer with no extra jnp.pad pass over
    # the activation matrix in HBM. Token id 0 is valid; pad rows are sliced off.
    if B_pad != B:
        xs = jnp.pad(xs, ((0, B_pad - B), (0, 0)))

    # --- glue: embedding gather + flatten (plain JAX, bf16) ---
    # TODO(synk): fuse the gather into the kernel via PrefetchScalarGridSpec +
    # per-row DMA; also note jnp.take clamps out-of-range ids (nn.Embedding raises).
    x = jnp.take(params["emb"], xs, axis=0).reshape(B_pad, d_in)

    # VMEM budget: single-buffered resident weights + double-buffered x/out tiles
    # + f32 intermediates, with headroom. (Default scoped limits are 16/32 MiB.)
    out_bytes = jnp.dtype(out_dtype).itemsize
    vmem_needed = (
        d_in * hidden_pad * 2 + hidden_pad * V * 2      # bf16 weights (single-buffered)
        + hidden_pad * 4 + V * 4                        # f32 biases
        + 2 * tile_m * d_in * 2                         # x tile, double-buffered
        + 2 * tile_m * V * out_bytes                    # out tile, double-buffered
        + tile_m * hidden_pad * 4                       # h
        + 3 * tile_m * V * 4                            # logits / e / scaled
    )
    vmem_limit = min(100 * 1024 * 1024, max(32 * 1024 * 1024, int(vmem_needed * 1.3)))

    grid = (B_pad // tile_m,)
    out = pl.pallas_call(
        _nnlm_kernel,
        out_shape=jax.ShapeDtypeStruct((B_pad, V), out_dtype),
        grid_spec=pltpu.PrefetchScalarGridSpec(
            num_scalar_prefetch=0,
            grid=grid,
            in_specs=[
                # activations stream over the batch grid axis (full-extent K block;
                # no K padding needed)
                pl.BlockSpec((tile_m, d_in), lambda b: (b, 0)),
                # weights/biases: constant index_map -> resident, single-buffered
                _resident_spec((d_in, hidden_pad), lambda b: (0, 0)),
                _resident_spec((1, hidden_pad), lambda b: (0, 0)),
                _resident_spec((hidden_pad, V), lambda b: (0, 0)),
                _resident_spec((1, V), lambda b: (0, 0)),
            ],
            out_specs=pl.BlockSpec((tile_m, V), lambda b: (b, 0)),
        ),
        compiler_params=pltpu.CompilerParams(
            dimension_semantics=("parallel",),   # shard batch tiles across TCs (v7x)
            vmem_limit_bytes=vmem_limit,
        ),
    )(x, params["wh"], params["bh"], params["wu"], params["bu"])
    return out[:B]


# ---------------------------------------------------------------------------
# Pure-JAX references for correctness checks
# ---------------------------------------------------------------------------
def nnlm_reference(xs, emb_table, w_h, b_h, w_u, b_u, *, mirror_bf16=False):
    B, ctx = xs.shape
    F = emb_table.shape[1]
    if mirror_bf16:
        emb = emb_table.astype(jnp.bfloat16).astype(jnp.float32)
        wh = w_h.astype(jnp.bfloat16).astype(jnp.float32)
        wu = w_u.astype(jnp.bfloat16).astype(jnp.float32)
    else:
        emb, wh, wu = emb_table, w_h, w_u
    x = jnp.take(emb, xs, axis=0).reshape(B, ctx * F).astype(jnp.float32)
    h = jnp.tanh(x @ wh.T + b_h)
    if mirror_bf16:
        h = h.astype(jnp.bfloat16).astype(jnp.float32)
    logits = h @ wu.T + b_u
    return jax.nn.softmax(logits, axis=1)


if __name__ == "__main__":
    # Small, module-consistent shapes (params_feature / params_hidden shrunk
    # from 2000 / 1000 to TPU-friendly small sizes).
    vocab_size = 512
    lookback_count = 3          # -> n-1 = 3 context tokens
    feature = 64                # stands in for params_feature (ctx*F = 192)
    hidden = 256                # stands in for params_hidden
    batch = 200                 # not a multiple of 128: exercises padding + grid=(2,)

    key = jax.random.PRNGKey(0)
    k_emb, k_wh, k_bh, k_wu, k_bu, k_xs = jax.random.split(key, 6)

    ctx = lookback_count
    d_in = ctx * feature

    # Deterministic parameter init (uniform, roughly PyTorch-style scales).
    emb_table = jax.random.normal(k_emb, (vocab_size, feature), jnp.float32)
    lim_h = 1.0 / np.sqrt(d_in)
    w_h = jax.random.uniform(k_wh, (hidden, d_in), jnp.float32, -lim_h, lim_h)
    b_h = jax.random.uniform(k_bh, (hidden,), jnp.float32, -lim_h, lim_h)
    lim_u = 1.0 / np.sqrt(hidden)
    w_u = jax.random.uniform(k_wu, (vocab_size, hidden), jnp.float32, -lim_u, lim_u)
    b_u = jax.random.uniform(k_bu, (vocab_size,), jnp.float32, -lim_u, lim_u)

    xs = jax.random.randint(k_xs, (batch, ctx), 0, vocab_size, jnp.int32)

    params = prepare_params(emb_table, w_h, b_h, w_u, b_u, ctx)
    out = nnlm_forward(xs, params)
    out = jax.block_until_ready(out)
    assert out.shape == (batch, vocab_size)
    assert out.dtype == jnp.float32

    # Check against a reference that mirrors the kernel's bf16 matmul precision.
    ref_bf16 = jax.block_until_ready(
        nnlm_reference(xs, emb_table, w_h, b_h, w_u, b_u, mirror_bf16=True))
    np.testing.assert_allclose(np.asarray(out), np.asarray(ref_bf16),
                               rtol=1e-3, atol=1e-5)

    # Loose check against the full-f32 module semantics (bf16 quantization only).
    ref_f32 = jax.block_until_ready(
        nnlm_reference(xs, emb_table, w_h, b_h, w_u, b_u, mirror_bf16=False))
    np.testing.assert_allclose(np.asarray(out), np.asarray(ref_f32),
                               rtol=5e-2, atol=1e-3)

    # Rows are probability distributions (exact-reciprocal softmax; f32 rounding only).
    np.testing.assert_allclose(np.asarray(out).sum(axis=1), np.ones(batch), rtol=1e-4)

    print("KERNEL_OK")
</pallas_src>

<mosaic_0001>
module attributes {stable_mosaic.version = 11 : i64} {
  func.func @_nnlm_kernel(%arg0: i32, %arg1: memref<128x192xbf16, #tpu.memory_space<vmem>>, %arg2: memref<192x256xbf16, #tpu.memory_space<vmem>>, %arg3: memref<1x256xf32, #tpu.memory_space<vmem>>, %arg4: memref<256x512xbf16, #tpu.memory_space<vmem>>, %arg5: memref<1x512xf32, #tpu.memory_space<vmem>>, %arg6: memref<128x512xf32, #tpu.memory_space<vmem>>) attributes {dimension_semantics = [#tpu.dimension_semantics<parallel>], iteration_bounds = array<i64: 2>, scalar_prefetch = 0 : i64, scratch_operands = 0 : i64, tpu.core_type = #tpu.core_type<tc>, window_params = [{transform_indices = @transform_0, window_bounds = array<i64: 128, 192>}, {pipeline_mode = #tpu.pipeline_mode<synchronous>, transform_indices = @transform_1, window_bounds = array<i64: 192, 256>}, {pipeline_mode = #tpu.pipeline_mode<synchronous>, transform_indices = @transform_2, window_bounds = array<i64: 1, 256>}, {pipeline_mode = #tpu.pipeline_mode<synchronous>, transform_indices = @transform_3, window_bounds = array<i64: 256, 512>}, {pipeline_mode = #tpu.pipeline_mode<synchronous>, transform_indices = @transform_4, window_bounds = array<i64: 1, 512>}, {transform_indices = @transform_5, window_bounds = array<i64: 128, 512>}]} {
    %c0 = arith.constant 0 : index
    %c0_0 = arith.constant 0 : index
    %0 = vector.load %arg1[%c0, %c0_0] : memref<128x192xbf16, #tpu.memory_space<vmem>>, vector<128x192xbf16>
    %c0_1 = arith.constant 0 : index
    %c0_2 = arith.constant 0 : index
    %1 = vector.load %arg2[%c0_1, %c0_2] : memref<192x256xbf16, #tpu.memory_space<vmem>>, vector<192x256xbf16>
    %cst = arith.constant dense<0.000000e+00> : vector<128x256xf32>
    %2 = tpu.matmul %0, %1, %cst {dimension_numbers = #tpu.dot_dimension_numbers<[1], [0], [0], [1], [0, 0, 1, 1], [], []>} : vector<128x192xbf16>, vector<192x256xbf16>, vector<128x256xf32> -> vector<128x256xf32>
    %c0_3 = arith.constant 0 : index
    %c0_4 = arith.constant 0 : index
    %3 = vector.load %arg3[%c0_3, %c0_4] : memref<1x256xf32, #tpu.memory_space<vmem>>, vector<1x256xf32>
    %4 = vector.broadcast %3 : vector<1x256xf32> to vector<128x256xf32>
    %5 = arith.addf %2, %4 : vector<128x256xf32>
    %6 = math.tanh %5 : vector<128x256xf32>
    %7 = arith.truncf %6 : vector<128x256xf32> to vector<128x256xbf16>
    %c0_5 = arith.constant 0 : index
    %c0_6 = arith.constant 0 : index
    %8 = vector.load %arg4[%c0_5, %c0_6] : memref<256x512xbf16, #tpu.memory_space<vmem>>, vector<256x512xbf16>
    %cst_7 = arith.constant dense<0.000000e+00> : vector<128x512xf32>
    %9 = tpu.matmul %7, %8, %cst_7 {dimension_numbers = #tpu.dot_dimension_numbers<[1], [0], [0], [1], [0, 0, 1, 1], [], []>} : vector<128x256xbf16>, vector<256x512xbf16>, vector<128x512xf32> -> vector<128x512xf32>
    %c0_8 = arith.constant 0 : index
    %c0_9 = arith.constant 0 : index
    %10 = vector.load %arg5[%c0_8, %c0_9] : memref<1x512xf32, #tpu.memory_space<vmem>>, vector<1x512xf32>
    %11 = vector.broadcast %10 : vector<1x512xf32> to vector<128x512xf32>
    %12 = arith.addf %9, %11 : vector<128x512xf32>
    %cst_10 = arith.constant dense<0xFF800000> : vector<128xf32>
    %13 = vector.multi_reduction <maximumf>, %12, %cst_10 [1] : vector<128x512xf32> to vector<128xf32>
    %14 = vector.shape_cast %13 : vector<128xf32> to vector<128x1xf32>
    %15 = vector.broadcast %14 : vector<128x1xf32> to vector<128x512xf32>
    %16 = arith.subf %12, %15 : vector<128x512xf32>
    %17 = math.exp %16 : vector<128x512xf32>
    %cst_11 = arith.constant dense<0.000000e+00> : vector<128xf32>
    %18 = vector.multi_reduction <add>, %17, %cst_11 [1] : vector<128x512xf32> to vector<128xf32>
    %19 = vector.shape_cast %18 : vector<128xf32> to vector<128x1xf32>
    %20 = tpu.reciprocal %19 : vector<128x1xf32> -> vector<128x1xf32>
    %21 = vector.broadcast %20 : vector<128x1xf32> to vector<128x512xf32>
    %22 = arith.mulf %17, %21 : vector<128x512xf32>
    %c0_12 = arith.constant 0 : index
    %c0_13 = arith.constant 0 : index
    %23 = vector.load %arg6[%c0_12, %c0_13] : memref<128x512xf32, #tpu.memory_space<vmem>>, vector<128x512xf32>
    tpu.vector_store %arg6[%c0_12, %c0_13], %22 {strides = array<i32>} : memref<128x512xf32, #tpu.memory_space<vmem>>, vector<128x512xf32>,
    return
  }
  func.func @transform_0(%arg0: i32) -> (i32, i32) {
    %c0_i32 = arith.constant 0 : i32
    %c0_i32_0 = arith.constant 0 : i32
    return %arg0, %c0_i32 : i32, i32
  }
  func.func @transform_1(%arg0: i32) -> (i32, i32) {
    %c0_i32 = arith.constant 0 : i32
    %c0_i32_0 = arith.constant 0 : i32
    %c0_i32_1 = arith.constant 0 : i32
    return %c0_i32, %c0_i32_0 : i32, i32
  }
  func.func @transform_2(%arg0: i32) -> (i32, i32) {
    %c0_i32 = arith.constant 0 : i32
    %c0_i32_0 = arith.constant 0 : i32
    %c0_i32_1 = arith.constant 0 : i32
    return %c0_i32, %c0_i32_0 : i32, i32
  }
  func.func @transform_3(%arg0: i32) -> (i32, i32) {
    %c0_i32 = arith.constant 0 : i32
    %c0_i32_0 = arith.constant 0 : i32
    %c0_i32_1 = arith.constant 0 : i32
    return %c0_i32, %c0_i32_0 : i32, i32
  }
  func.func @transform_4(%arg0: i32) -> (i32, i32) {
    %c0_i32 = arith.constant 0 : i32
    %c0_i32_0 = arith.constant 0 : i32
    %c0_i32_1 = arith.constant 0 : i32
    return %c0_i32, %c0_i32_0 : i32, i32
  }
  func.func @transform_5(%arg0: i32) -> (i32, i32) {
    %c0_i32 = arith.constant 0 : i32
    %c0_i32_0 = arith.constant 0 : i32
    return %arg0, %c0_i32 : i32, i32
  }
}

</mosaic_0001>

<llo_original>
// kernel: tpu_custom_call.1
$region0: #{tpu_custom_call.1}
  #allocation0 [shape = 'u32[]', space=smem, size = 0x4, offset = 0x4, fixed_abs, tag = 'smem constant byte address 0x4 - core index']
  #allocation1 [shape = 'u32[72,128]{1,0:T(1,128)}', space=vmem, size = 0x9000, scoped, tag = 'internal scratch']
  %s0 = inlined_call_operand.vmem [shape: bf16[256,192], index: 0, kind: input, shape index: {}]
  %s1 = inlined_call_operand.vmem [shape: bf16[192,256], index: 1, kind: input, shape index: {}]
  %s2 = inlined_call_operand.vmem [shape: f32[1,256], index: 2, kind: input, shape index: {}]
  %s3 = inlined_call_operand.hbm [shape: bf16[256,512], index: 3, kind: input, shape index: {}]
  %s4 = inlined_call_operand.vmem [shape: f32[1,512], index: 4, kind: input, shape index: {}]
  %s5 = inlined_call_operand.hbm [shape: f32[256,512], index: 5, kind: output, shape index: {}]
  %s6 = sld [smem:[#allocation0]]
  $region57: #{tpu_custom_call.1} parent=0
    _
  %s8 = ssub.s32 1, %s6
  %s9 = scalar_select 0, %s8, %s6
  $region1: #{tpu_custom_call.1} parent=0
    #allocation2 [shape = 'u8[262144]{0}', space=vmem, size = 0x40000, scoped, tag = 'input window, operand 3, single buffered']
    #allocation3 [shape = 's32[2]{0}', space=sflag, size = 0x8, scoped, tag = 'scoped memory for tpu_custom_call.1']
    #allocation4 [shape = 's32[2]{0}', space=sflag, size = 0x8, scoped, tag = 'scoped memory for tpu_custom_call.1']
    #allocation5 [shape = 'u8[524288]{0}', space=vmem, size = 0x80000, scoped, tag = 'output window, operand 0']
    %10 = vsyncpa [#allocation3], 0
    %11 = vsyncpa [#allocation4], 0
    %s12 = scalar_lea.sflag [#allocation4], 1
    %13 = vsyncpa %s12, 0
    loop: start=0, step=1, limit=4
    $region2: #{tpu_custom_call.1} parent=1 // loop_pre_header
      _
    $region3: #{tpu_custom_call.1} parent=1 // loop_header
      %s15 = sphi 0, %s19
      %p16 = scmp.ge.s32.totalorder %s15, 4
      %s25 = sphi 0, %s27
      %s28 = sphi 0, %s25
      %s29 = sphi 0, %s28
      %s45 = sphi 0, %s29
      %s49 = sphi 0, %s49
      %s51 = sphi 0, %s49
      %s52 = sphi 0, %s51
      %s66 = sphi 0, %s52
      %s70 = sphi 0, %s70
      %s72 = sphi 0, %s70
      %s73 = sphi 0, %s72
      %s87 = sphi 0, %s73
      %s91 = sphi 0, %s91
      %s93 = sphi 0, %s91
      %s94 = sphi 0, %s93
      %s108 = sphi 0, %s94
      %s112 = sphi 0, %s112
      %s114 = sphi 0, %s112
      %s115 = sphi 0, %s114
      %s129 = sphi 0, %s115
      %s135 = sphi 0, %s137
      %s138 = sphi 0, %s135
      %s139 = sphi 0, %s138
      %s155 = sphi 0, %s139
    $region4: #{tpu_custom_call.1} parent=1 // loop_header_branch
      %18 = sbr.rel (%p16) target = $region8
    $region5: #{tpu_custom_call.1} parent=1 // loop_body
      %s20 = ssub.s32 %s15, 1
      %s21 = ssub.s32 %s15, 2
      %s22 = sadd.s32 %s15, 1
      %s23 = ssub.s32 %s15, %s22
      %p24 = scmp.eq.s32.totalorder %s23, 0
      %s26 = sadd.s32 %s25, 1
      %s27 = scalar_select %p24, %s25, %s26
      %p30 = pneg %p24
      %p31 = scmp.eq.s32.totalorder %s15, 1
      %p32 = por %p30, %p31
      %p33 = scmp.ne.s32.totalorder %s25, %s28
      %p34 = scmp.eq.s32.totalorder %s15, 0
      %p35 = por %p33, %p34
      %p36 = scmp.ne.s32.totalorder %s25, %s28
      %p37 = scmp.eq.s32.totalorder %s20, 1
      %p38 = por %p36, %p37
      %p39 = scmp.ne.s32.totalorder %s28, %s29
      %p40 = scmp.eq.s32.totalorder %s20, 0
      %p41 = por %p39, %p40
      %p42 = scmp.ne.s32.totalorder %s28, %s29
      %p43 = scmp.eq.s32.totalorder %s21, 1
      %p44 = por %p42, %p43
      %p46 = scmp.ne.s32.totalorder %s29, %s45
      %p47 = scmp.eq.s32.totalorder %s21, 0
      %p48 = por %p46, %p47
      %s50 = sadd.s32 %s49, 1
      %p53 = scmp.eq.s32.totalorder %s15, 1
      %p54 = scmp.ne.s32.totalorder %s49, %s51
      %p55 = scmp.eq.s32.totalorder %s15, 0
      %p56 = por %p54, %p55
      %p57 = scmp.ne.s32.totalorder %s49, %s51
      %p58 = scmp.eq.s32.totalorder %s20, 1
      %p59 = por %p57, %p58
      %p60 = scmp.ne.s32.totalorder %s51, %s52
      %p61 = scmp.eq.s32.totalorder %s20, 0
      %p62 = por %p60, %p61
      %p63 = scmp.ne.s32.totalorder %s51, %s52
      %p64 = scmp.eq.s32.totalorder %s21, 1
      %p65 = por %p63, %p64
      %p67 = scmp.ne.s32.totalorder %s52, %s66
      %p68 = scmp.eq.s32.totalorder %s21, 0
      %p69 = por %p67, %p68
      %s71 = sadd.s32 %s70, 1
      %p74 = scmp.eq.s32.totalorder %s15, 1
      %p75 = scmp.ne.s32.totalorder %s70, %s72
      %p76 = scmp.eq.s32.totalorder %s15, 0
      %p77 = por %p75, %p76
      %p78 = scmp.ne.s32.totalorder %s70, %s72
      %p79 = scmp.eq.s32.totalorder %s20, 1
      %p80 = por %p78, %p79
      %p81 = scmp.ne.s32.totalorder %s72, %s73
      %p82 = scmp.eq.s32.totalorder %s20, 0
      %p83 = por %p81, %p82
      %p84 = scmp.ne.s32.totalorder %s72, %s73
      %p85 = scmp.eq.s32.totalorder %s21, 1
      %p86 = por %p84, %p85
      %p88 = scmp.ne.s32.totalorder %s73, %s87
      %p89 = scmp.eq.s32.totalorder %s21, 0
      %p90 = por %p88, %p89
      %s92 = sadd.s32 %s91, 1
      %p95 = scmp.eq.s32.totalorder %s15, 1
      %p96 = scmp.ne.s32.totalorder %s91, %s93
      %p97 = scmp.eq.s32.totalorder %s15, 0
      %p98 = por %p96, %p97
      %p99 = scmp.ne.s32.totalorder %s91, %s93
      %p100 = scmp.eq.s32.totalorder %s20, 1
      %p101 = por %p99, %p100
      %p102 = scmp.ne.s32.totalorder %s93, %s94
      %p103 = scmp.eq.s32.totalorder %s20, 0
      %p104 = por %p102, %p103
      %p105 = scmp.ne.s32.totalorder %s93, %s94
      %p106 = scmp.eq.s32.totalorder %s21, 1
      %p107 = por %p105, %p106
      %p109 = scmp.ne.s32.totalorder %s94, %s108
      %p110 = scmp.eq.s32.totalorder %s21, 0
      %p111 = por %p109, %p110
      %s113 = sadd.s32 %s112, 1
      %p116 = scmp.eq.s32.totalorder %s15, 1
      %p117 = scmp.ne.s32.totalorder %s112, %s114
      %p118 = scmp.eq.s32.totalorder %s15, 0
      %p119 = por %p117, %p118
      %p120 = scmp.ne.s32.totalorder %s112, %s114
      %p121 = scmp.eq.s32.totalorder %s20, 1
      %p122 = por %p120, %p121
      %p123 = scmp.ne.s32.totalorder %s114, %s115
      %p124 = scmp.eq.s32.totalorder %s20, 0
      %p125 = por %p123, %p124
      %p126 = scmp.ne.s32.totalorder %s114, %s115
      %p127 = scmp.eq.s32.totalorder %s21, 1
      %p128 = por %p126, %p127
      %p130 = scmp.ne.s32.totalorder %s115, %s129
      %p131 = scmp.eq.s32.totalorder %s21, 0
      %p132 = por %p130, %p131
      %s133 = ssub.s32 %s15, %s22
      %p134 = scmp.eq.s32.totalorder %s133, 0
      %s136 = sadd.s32 %s135, 1
      %s137 = scalar_select %p134, %s135, %s136
      %p140 = pneg %p134
      %p141 = scmp.eq.s32.totalorder %s15, 1
      %p142 = por %p140, %p141
      %p143 = scmp.ne.s32.totalorder %s135, %s138
      %p144 = scmp.eq.s32.totalorder %s15, 0
      %p145 = por %p143, %p144
      %p146 = scmp.ne.s32.totalorder %s135, %s138
      %p147 = scmp.eq.s32.totalorder %s20, 1
      %p148 = por %p146, %p147
      %p149 = scmp.ne.s32.totalorder %s138, %s139
      %p150 = scmp.eq.s32.totalorder %s20, 0
      %p151 = por %p149, %p150
      %p152 = scmp.ne.s32.totalorder %s138, %s139
      %p153 = scmp.eq.s32.totalorder %s21, 1
      %p154 = por %p152, %p153
      %p156 = scmp.ne.s32.totalorder %s139, %s155
      %p157 = scmp.eq.s32.totalorder %s21, 0
      %p158 = por %p156, %p157
      %p159 = scmp.le.s32.totalorder 1, %s15
      %p160 = scmp.lt.s32.totalorder %s15, 3
      %p161 = pnand %p159, %p160
      %p162 = pneg %p161
      // Predicated region
      $region9: #{tpu_custom_call.1} parent=5 // pred_check
        _
      $region10: #{tpu_custom_call.1} parent=5 // pred_check_branch
        %164 = sbr.rel (%p161) target = $region12
      $region11: #{tpu_custom_call.1} parent=5 // pred_region
        %s165 = ssub.s32 %s15, 1
        // Predicated region
        $region13: #{tpu_custom_call.1} parent=11 // pred_check
          %p166 = pneg %p62
        $region14: #{tpu_custom_call.1} parent=11 // pred_check_branch
          %168 = sbr.rel (%p166) target = $region16
        $region15: #{tpu_custom_call.1} parent=11 // pred_region
          _
        $region16: #{tpu_custom_call.1} parent=11 // pred_fallthru
          _
        // Predicated region
        $region17: #{tpu_custom_call.1} parent=11 // pred_check
          %p169 = pneg %p83
        $region18: #{tpu_custom_call.1} parent=11 // pred_check_branch
          %171 = sbr.rel (%p169) target = $region20
        $region19: #{tpu_custom_call.1} parent=11 // pred_region
          _
        $region20: #{tpu_custom_call.1} parent=11 // pred_fallthru
          _
        // Predicated region
        $region21: #{tpu_custom_call.1} parent=11 // pred_check
          %p172 = pneg %p104
        $region22: #{tpu_custom_call.1} parent=11 // pred_check_branch
          %174 = sbr.rel (%p172) target = $region24
        $region23: #{tpu_custom_call.1} parent=11 // pred_region
          %176 = vsyncadd [#allocation3], 0
          %s177 = sshll.u32 %s3, 4
          %s178 = int_to_ptr.hbm [resolvable:$true] %s177
          %s179 = sshll.u32 [#allocation2], 4
          %s180 = int_to_ptr.vmem [resolvable:$true] %s179
          %185 = dma.hbm_to_vmem [thread:$0]  %s178, 8192, %s180, [#allocation3], 256, 256, 16
        $region24: #{tpu_custom_call.1} parent=11 // pred_fallthru
          _
        // Predicated region
        $region25: #{tpu_custom_call.1} parent=11 // pred_check
          %p186 = pneg %p125
        $region26: #{tpu_custom_call.1} parent=11 // pred_check_branch
          %188 = sbr.rel (%p186) target = $region28
        $region27: #{tpu_custom_call.1} parent=11 // pred_region
          _
        $region28: #{tpu_custom_call.1} parent=11 // pred_fallthru
          _
      $region12: #{tpu_custom_call.1} parent=5 // pred_fallthru
        _
      %p189 = scmp.lt.s32.totalorder %s15, 2
      // Predicated region
      $region29: #{tpu_custom_call.1} parent=5 // pred_check
        %p190 = pneg %p189
      $region30: #{tpu_custom_call.1} parent=5 // pred_check_branch
        %192 = sbr.rel (%p190) target = $region32
      $region31: #{tpu_custom_call.1} parent=5 // pred_region
        // Predicated region
        $region33: #{tpu_custom_call.1} parent=31 // pred_check
          %p193 = pneg %p35
        $region34: #{tpu_custom_call.1} parent=31 // pred_check_branch
          %195 = sbr.rel (%p193) target = $region36
        $region35: #{tpu_custom_call.1} parent=31 // pred_region
          %s196 = smul.u32 16, %s15
          %p197 = scmp.lt.s32.totalorder %s196, 31
          %s198 = scalar_select %p197, %s196, 31
          %s199 = smul.addr %s198, 2
          %s200 = smul.addr %s199, 4
          %s201 = scalar_lea.vmem %s0, %s200
          %s202 = smul.u32 16, %s15
        $region36: #{tpu_custom_call.1} parent=31 // pred_fallthru
          _
      $region32: #{tpu_custom_call.1} parent=5 // pred_fallthru
        _
      %p203 = scmp.le.s32.totalorder 1, %s15
      %p204 = scmp.lt.s32.totalorder %s15, 3
      %p205 = pnand %p203, %p204
      %p206 = pneg %p205
      // Predicated region
      $region37: #{tpu_custom_call.1} parent=5 // pred_check
        _
      $region38: #{tpu_custom_call.1} parent=5 // pred_check_branch
        %208 = sbr.rel (%p205) target = $region40
      $region39: #{tpu_custom_call.1} parent=5 // pred_region
        %s209 = ssub.s32 %s15, 1
        // Predicated region
        $region41: #{tpu_custom_call.1} parent=39 // pred_check
          %p210 = pneg %p104
        $region42: #{tpu_custom_call.1} parent=39 // pred_check_branch
          %212 = sbr.rel (%p210) target = $region44
        $region43: #{tpu_custom_call.1} parent=39 // pred_region
          %214 = dma.done [#allocation3], 8192
        $region44: #{tpu_custom_call.1} parent=39 // pred_fallthru
          _
        %s215 = smul.u32 16, %s20
        %p216 = scmp.lt.s32.totalorder %s215, 31
        %s217 = scalar_select %p216, %s215, 31
        %s218 = smul.addr %s217, 2
        %s219 = smul.addr %s218, 4
        %s220 = scalar_lea.vmem %s0, %s219
        %p221 = pneg %p41
        %p222 = pneg %p38
        %p223 = pneg %p62
        %p224 = pneg %p59
        %p225 = pneg %p83
        %p226 = pneg %p80
        %p227 = pneg %p104
        %p228 = pneg %p101
        %p229 = pneg %p125
        %p230 = pneg %p122
        %p231 = pneg %p151
        %p232 = pneg %p148
        %s233 = sand.u32 %s138, 1
        %s234 = scalar_lea.sflag [#allocation4], %s233
        %s235 = sand.u32 %s138, 1
        %s236 = smul.addr %s235, 512
        %s237 = scalar_lea.vmem [#allocation5], %s236
        %s238 = smul.u32 16, %s20
        %p239 = scmp.lt.s32.totalorder %s238, 31
        %s240 = scalar_select %p239, %s238, 31
        %s241 = smul.addr %s240, 2
        %s242 = smul.addr %s241, 4
        %s243 = scalar_lea.vmem %s0, %s242
        %s244 = smul.u32 16, %s20
        %s245 = smul.u32 16, %s20
        %v247 = vld [vmem:[%s243] sm:$0xff]
        %v248 = vld [vmem:[%s243 + $0x8] sm:$0xff]
        %v249 = vld [vmem:[%s243 + $0x10] sm:$0xff]
        %v250 = vld [vmem:[%s243 + $0x18] sm:$0xff]
        %v251 = vld [vmem:[%s243 + $0x20] sm:$0xff]
        %v252 = vld [vmem:[%s243 + $0x28] sm:$0xff]
        %v253 = vld [vmem:[%s243 + $0x30] sm:$0xff]
        %v254 = vld [vmem:[%s243 + $0x38] sm:$0xff]
        %v255 = vld [vmem:[%s243 + $0x40] sm:$0xff]
        %v256 = vld [vmem:[%s243 + $0x48] sm:$0xff]
        %v257 = vld [vmem:[%s243 + $0x50] sm:$0xff]
        %v258 = vld [vmem:[%s243 + $0x58] sm:$0xff]
        %v259 = vld [vmem:[%s243 + $0x60] sm:$0xff]
        %v260 = vld [vmem:[%s243 + $0x68] sm:$0xff]
        %v261 = vld [vmem:[%s243 + $0x70] sm:$0xff]
        %v262 = vld [vmem:[%s243 + $0x78] sm:$0xff]
        %v263 = vld [vmem:[%s1] sm:$0xff]
        %v264 = vld [vmem:[%s1 + $0x8] sm:$0xff]
        %v265 = vld [vmem:[%s1 + $0x10] sm:$0xff]
        %v266 = vld [vmem:[%s1 + $0x18] sm:$0xff]
        %v267 = vld [vmem:[%s1 + $0x20] sm:$0xff]
        %v268 = vld [vmem:[%s1 + $0x28] sm:$0xff]
        %v269 = vld [vmem:[%s1 + $0x30] sm:$0xff]
        %v270 = vld [vmem:[%s1 + $0x38] sm:$0xff]
        %v271 = vld [vmem:[%s1 + $0x40] sm:$0xff]
        %v272 = vld [vmem:[%s1 + $0x48] sm:$0xff]
        %v273 = vld [vmem:[%s1 + $0x50] sm:$0xff]
        %v274 = vld [vmem:[%s1 + $0x58] sm:$0xff]
        %v275 = vld [vmem:[%s1 + $0x60] sm:$0xff]
        %v276 = vld [vmem:[%s1 + $0x68] sm:$0xff]
        %v277 = vld [vmem:[%s1 + $0x70] sm:$0xff]
        %v278 = vld [vmem:[%s1 + $0x78] sm:$0xff]
        %v279 = vld [vmem:[%s1 + $0x80] sm:$0xff]
        %v280 = vld [vmem:[%s1 + $0x88] sm:$0xff]
        %v281 = vld [vmem:[%s1 + $0x90] sm:$0xff]
        %v282 = vld [vmem:[%s1 + $0x98] sm:$0xff]
        %v283 = vld [vmem:[%s1 + $0xa0] sm:$0xff]
        %v284 = vld [vmem:[%s1 + $0xa8] sm:$0xff]
        %v285 = vld [vmem:[%s1 + $0xb0] sm:$0xff]
        %v286 = vld [vmem:[%s1 + $0xb8] sm:$0xff]
        %v287 = vld [vmem:[%s2] sm:$0x3]
        %v289 = vperm.slane %v287, 0
        %v290 = vperm.slane %v287, 1
        %v309 = vunpack.c.l.b16 %v247
        %v310 = vunpack.c.h.b16 %v247
        %v311 = vunpack.c.l.b16 %v248
        %v312 = vunpack.c.h.b16 %v248
        %v313 = vunpack.c.l.b16 %v249
        %v314 = vunpack.c.h.b16 %v249
        %v315 = vunpack.c.l.b16 %v250
        %v316 = vunpack.c.h.b16 %v250
        %v317 = vunpack.c.l.b16 %v251
        %v318 = vunpack.c.h.b16 %v251
        %v319 = vunpack.c.l.b16 %v252
        %v320 = vunpack.c.h.b16 %v252
        %v321 = vunpack.c.l.b16 %v253
        %v322 = vunpack.c.h.b16 %v253
        %v323 = vunpack.c.l.b16 %v254
        %v324 = vunpack.c.h.b16 %v254
        %v325 = vunpack.c.l.b16 %v255
        %v326 = vunpack.c.h.b16 %v255
        %v327 = vunpack.c.l.b16 %v256
        %v328 = vunpack.c.h.b16 %v256
        %v329 = vunpack.c.l.b16 %v257
        %v330 = vunpack.c.h.b16 %v257
        %v331 = vunpack.c.l.b16 %v258
        %v332 = vunpack.c.h.b16 %v258
        %v333 = vunpack.c.l.b16 %v259
        %v334 = vunpack.c.h.b16 %v259
        %v335 = vunpack.c.l.b16 %v260
        %v336 = vunpack.c.h.b16 %v260
        %v337 = vunpack.c.l.b16 %v261
        %v338 = vunpack.c.h.b16 %v261
        %v339 = vunpack.c.l.b16 %v262
        %v340 = vunpack.c.h.b16 %v262
        %v341 = vpack.c.b16 %v311, %v309
        %v342 = vpack.c.b16 %v312, %v310
        %v343 = vpack.c.b16 %v315, %v313
        %v344 = vpack.c.b16 %v316, %v314
        %v345 = vpack.c.b16 %v319, %v317
        %v346 = vpack.c.b16 %v320, %v318
        %v347 = vpack.c.b16 %v323, %v321
        %v348 = vpack.c.b16 %v324, %v322
        %v349 = vpack.c.b16 %v327, %v325
        %v350 = vpack.c.b16 %v328, %v326
        %v351 = vpack.c.b16 %v331, %v329
        %v352 = vpack.c.b16 %v332, %v330
        %v353 = vpack.c.b16 %v335, %v333
        %v354 = vpack.c.b16 %v336, %v334
        %v355 = vpack.c.b16 %v339, %v337
        %v356 = vpack.c.b16 %v340, %v338
        %v389 = vunpack.c.l.b16 %v263
        %v390 = vunpack.c.h.b16 %v263
        %v391 = vunpack.c.l.b16 %v264
        %v392 = vunpack.c.h.b16 %v264
        %v393 = vunpack.c.l.b16 %v265
        %v394 = vunpack.c.h.b16 %v265
        %v395 = vunpack.c.l.b16 %v266
        %v396 = vunpack.c.h.b16 %v266
        %v397 = vunpack.c.l.b16 %v267
        %v398 = vunpack.c.h.b16 %v267
        %v399 = vunpack.c.l.b16 %v268
        %v400 = vunpack.c.h.b16 %v268
        %v401 = vunpack.c.l.b16 %v269
        %v402 = vunpack.c.h.b16 %v269
        %v403 = vunpack.c.l.b16 %v270
        %v404 = vunpack.c.h.b16 %v270
        %v405 = vunpack.c.l.b16 %v271
        %v406 = vunpack.c.h.b16 %v271
        %v407 = vunpack.c.l.b16 %v272
        %v408 = vunpack.c.h.b16 %v272
        %v409 = vunpack.c.l.b16 %v273
        %v410 = vunpack.c.h.b16 %v273
        %v411 = vunpack.c.l.b16 %v274
        %v412 = vunpack.c.h.b16 %v274
        %v413 = vunpack.c.l.b16 %v275
        %v414 = vunpack.c.h.b16 %v275
        %v415 = vunpack.c.l.b16 %v276
        %v416 = vunpack.c.h.b16 %v276
        %v417 = vunpack.c.l.b16 %v277
        %v418 = vunpack.c.h.b16 %v277
        %v419 = vunpack.c.l.b16 %v278
        %v420 = vunpack.c.h.b16 %v278
        %v421 = vunpack.c.l.b16 %v279
        %v422 = vunpack.c.h.b16 %v279
        %v423 = vunpack.c.l.b16 %v280
        %v424 = vunpack.c.h.b16 %v280
        %v425 = vunpack.c.l.b16 %v281
        %v426 = vunpack.c.h.b16 %v281
        %v427 = vunpack.c.l.b16 %v282
        %v428 = vunpack.c.h.b16 %v282
        %v429 = vunpack.c.l.b16 %v283
        %v430 = vunpack.c.h.b16 %v283
        %v431 = vunpack.c.l.b16 %v284
        %v432 = vunpack.c.h.b16 %v284
        %v433 = vunpack.c.l.b16 %v285
        %v434 = vunpack.c.h.b16 %v285
        %v435 = vunpack.c.l.b16 %v286
        %v436 = vunpack.c.h.b16 %v286
        %v437 = vpack.c.b16 %v391, %v389
        %v438 = vpack.c.b16 %v392, %v390
        %v439 = vpack.c.b16 %v395, %v393
        %v440 = vpack.c.b16 %v396, %v394
        %v441 = vpack.c.b16 %v399, %v397
        %v442 = vpack.c.b16 %v400, %v398
        %v443 = vpack.c.b16 %v403, %v401
        %v444 = vpack.c.b16 %v404, %v402
        %v445 = vpack.c.b16 %v407, %v405
        %v446 = vpack.c.b16 %v408, %v406
        %v447 = vpack.c.b16 %v411, %v409
        %v448 = vpack.c.b16 %v412, %v410
        %v449 = vpack.c.b16 %v415, %v413
        %v450 = vpack.c.b16 %v416, %v414
        %v451 = vpack.c.b16 %v419, %v417
        %v452 = vpack.c.b16 %v420, %v418
        %v453 = vpack.c.b16 %v423, %v421
        %v454 = vpack.c.b16 %v424, %v422
        %v455 = vpack.c.b16 %v427, %v425
        %v456 = vpack.c.b16 %v428, %v426
        %v457 = vpack.c.b16 %v431, %v429
        %v458 = vpack.c.b16 %v432, %v430
        %v459 = vpack.c.b16 %v435, %v433
        %v460 = vpack.c.b16 %v436, %v434
        %vm485 = vcmask 523264
        %v487 = vsel %vm485, %v342, 0
        %v490 = vsel %vm485, %v344, 0
        %v493 = vsel %vm485, %v346, 0
        %v496 = vsel %vm485, %v348, 0
        %v499 = vsel %vm485, %v350, 0
        %v502 = vsel %vm485, %v352, 0
        %v505 = vsel %vm485, %v354, 0
        %v508 = vsel %vm485, %v356, 0
        %510 = vmatpush.bf16.msra.mxu0 %v451
        %511 = vmatpush.bf16.msra.mxu0 %v449
        %512 = vmatpush.bf16.msra.mxu0 %v447
        %513 = vmatpush.bf16.msra.mxu0 %v445
        %514 = vmatpush.bf16.msra.mxu0 %v443
        %515 = vmatpush.bf16.msra.mxu0 %v441
        %516 = vmatpush.bf16.msra.mxu0 %v439
        %517 = vmatpush.bf16.msra.mxu0 %v437
        %518 = vmatmul.bf16.gmra.mxu0 %v341
        %v519 = vpop.f32.mrf.mxu0
        %v520 = vadd.f32 %v289, %v519
        %v521 = vpop.f32.mrf.mxu0
        %v522 = vadd.f32 %v289, %v521
        %523 = vmatmul.bf16.gmra.mxu0 %v343
        %v524 = vpop.f32.mrf.mxu0
        %v525 = vadd.f32 %v289, %v524
        %v526 = vpop.f32.mrf.mxu0
        %v527 = vadd.f32 %v289, %v526
        %528 = vmatmul.bf16.gmra.mxu0 %v345
        %v529 = vpop.f32.mrf.mxu0
        %v530 = vadd.f32 %v289, %v529
        %v531 = vpop.f32.mrf.mxu0
        %v532 = vadd.f32 %v289, %v531
        %533 = vmatmul.bf16.gmra.mxu0 %v347
        %v534 = vpop.f32.mrf.mxu0
        %v535 = vadd.f32 %v289, %v534
        %v536 = vpop.f32.mrf.mxu0
        %v537 = vadd.f32 %v289, %v536
        %538 = vmatmul.bf16.gmra.mxu0 %v349
        %v539 = vpop.f32.mrf.mxu0
        %v540 = vadd.f32 %v289, %v539
        %v541 = vpop.f32.mrf.mxu0
        %v542 = vadd.f32 %v289, %v541
        %543 = vmatmul.bf16.gmra.mxu0 %v351
        %v544 = vpop.f32.mrf.mxu0
        %v545 = vadd.f32 %v289, %v544
        %v546 = vpop.f32.mrf.mxu0
        %v547 = vadd.f32 %v289, %v546
        %548 = vmatmul.bf16.gmra.mxu0 %v353
        %v549 = vpop.f32.mrf.mxu0
        %v550 = vadd.f32 %v289, %v549
        %v551 = vpop.f32.mrf.mxu0
        %v552 = vadd.f32 %v289, %v551
        %553 = vmatmul.bf16.gmra.mxu0 %v355
        %v554 = vpop.f32.mrf.mxu0
        %v555 = vadd.f32 %v289, %v554
        %v556 = vpop.f32.mrf.mxu0
        %v557 = vadd.f32 %v289, %v556
        %558 = vdwg.mxu0
        %559 = vmatpush.bf16.msra.mxu0 0
        %560 = vmatpush.bf16.msra.mxu0 0
        %561 = vmatpush.bf16.msra.mxu0 0
        %562 = vmatpush.bf16.msra.mxu0 0
        %563 = vmatpush.bf16.msra.mxu0 %v459
        %564 = vmatpush.bf16.msra.mxu0 %v457
        %565 = vmatpush.bf16.msra.mxu0 %v455
        %566 = vmatpush.bf16.msra.mxu0 %v453
        %567 = vmatmul.bf16.gmra.mxu0 %v487
        %v568 = vpop.f32.mrf.mxu0
        %v569 = vadd.f32 %v520, %v568
        %v570 = vpop.f32.mrf.mxu0
        %v571 = vadd.f32 %v522, %v570
        %572 = vmatmul.bf16.gmra.mxu0 %v490
        %v573 = vpop.f32.mrf.mxu0
        %v574 = vadd.f32 %v525, %v573
        %v575 = vpop.f32.mrf.mxu0
        %v576 = vadd.f32 %v527, %v575
        %577 = vmatmul.bf16.gmra.mxu0 %v493
        %v578 = vpop.f32.mrf.mxu0
        %v579 = vadd.f32 %v530, %v578
        %v580 = vpop.f32.mrf.mxu0
        %v581 = vadd.f32 %v532, %v580
        %582 = vmatmul.bf16.gmra.mxu0 %v496
        %v583 = vpop.f32.mrf.mxu0
        %v584 = vadd.f32 %v535, %v583
        %v585 = vpop.f32.mrf.mxu0
        %v586 = vadd.f32 %v537, %v585
        %587 = vmatmul.bf16.gmra.mxu0 %v499
        %v588 = vpop.f32.mrf.mxu0
        %v589 = vadd.f32 %v540, %v588
        %v590 = vpop.f32.mrf.mxu0
        %v591 = vadd.f32 %v542, %v590
        %592 = vmatmul.bf16.gmra.mxu0 %v502
        %v593 = vpop.f32.mrf.mxu0
        %v594 = vadd.f32 %v545, %v593
        %v595 = vpop.f32.mrf.mxu0
        %v596 = vadd.f32 %v547, %v595
        %597 = vmatmul.bf16.gmra.mxu0 %v505
        %v598 = vpop.f32.mrf.mxu0
        %v599 = vadd.f32 %v550, %v598
        %v600 = vpop.f32.mrf.mxu0
        %v601 = vadd.f32 %v552, %v600
        %602 = vmatmul.bf16.gmra.mxu0 %v508
        %v603 = vpop.f32.mrf.mxu0
        %v604 = vadd.f32 %v555, %v603
        %v605 = vpop.f32.mrf.mxu0
        %v606 = vadd.f32 %v557, %v605
        %607 = vdwg.mxu0
        %608 = vmatpush.bf16.msra.mxu0 %v452
        %609 = vmatpush.bf16.msra.mxu0 %v450
        %610 = vmatpush.bf16.msra.mxu0 %v448
        %611 = vmatpush.bf16.msra.mxu0 %v446
        %612 = vmatpush.bf16.msra.mxu0 %v444
        %613 = vmatpush.bf16.msra.mxu0 %v442
        %614 = vmatpush.bf16.msra.mxu0 %v440
        %615 = vmatpush.bf16.msra.mxu0 %v438
        %616 = vmatmul.bf16.gmra.mxu0 %v341
        %v617 = vpop.f32.mrf.mxu0
        %v618 = vadd.f32 %v290, %v617
        %v619 = vpop.f32.mrf.mxu0
        %v620 = vadd.f32 %v290, %v619
        %621 = vmatmul.bf16.gmra.mxu0 %v343
        %v622 = vpop.f32.mrf.mxu0
        %v623 = vadd.f32 %v290, %v622
        %v624 = vpop.f32.mrf.mxu0
        %v625 = vadd.f32 %v290, %v624
        %626 = vmatmul.bf16.gmra.mxu0 %v345
        %v627 = vpop.f32.mrf.mxu0
        %v628 = vadd.f32 %v290, %v627
        %v629 = vpop.f32.mrf.mxu0
        %v630 = vadd.f32 %v290, %v629
        %631 = vmatmul.bf16.gmra.mxu0 %v347
        %v632 = vpop.f32.mrf.mxu0
        %v633 = vadd.f32 %v290, %v632
        %v634 = vpop.f32.mrf.mxu0
        %v635 = vadd.f32 %v290, %v634
        %636 = vmatmul.bf16.gmra.mxu0 %v349
        %v637 = vpop.f32.mrf.mxu0
        %v638 = vadd.f32 %v290, %v637
        %v639 = vpop.f32.mrf.mxu0
        %v640 = vadd.f32 %v290, %v639
        %641 = vmatmul.bf16.gmra.mxu0 %v351
        %v642 = vpop.f32.mrf.mxu0
        %v643 = vadd.f32 %v290, %v642
        %v644 = vpop.f32.mrf.mxu0
        %v645 = vadd.f32 %v290, %v644
        %646 = vmatmul.bf16.gmra.mxu0 %v353
        %v647 = vpop.f32.mrf.mxu0
        %v648 = vadd.f32 %v290, %v647
        %v649 = vpop.f32.mrf.mxu0
        %v650 = vadd.f32 %v290, %v649
        %651 = vmatmul.bf16.gmra.mxu0 %v355
        %v652 = vpop.f32.mrf.mxu0
        %v653 = vadd.f32 %v290, %v652
        %v654 = vpop.f32.mrf.mxu0
        %v655 = vadd.f32 %v290, %v654
        %656 = vdwg.mxu0
        %657 = vmatpush.bf16.msra.mxu0 0
        %658 = vmatpush.bf16.msra.mxu0 0
        %659 = vmatpush.bf16.msra.mxu0 0
        %660 = vmatpush.bf16.msra.mxu0 0
        %661 = vmatpush.bf16.msra.mxu0 %v460
        %662 = vmatpush.bf16.msra.mxu0 %v458
        %663 = vmatpush.bf16.msra.mxu0 %v456
        %664 = vmatpush.bf16.msra.mxu0 %v454
        %665 = vmatmul.bf16.gmra.mxu0 %v487
        %v666 = vpop.f32.mrf.mxu0
        %v667 = vadd.f32 %v618, %v666
        %v668 = vpop.f32.mrf.mxu0
        %v669 = vadd.f32 %v620, %v668
        %670 = vmatmul.bf16.gmra.mxu0 %v490
        %v671 = vpop.f32.mrf.mxu0
        %v672 = vadd.f32 %v623, %v671
        %v673 = vpop.f32.mrf.mxu0
        %v674 = vadd.f32 %v625, %v673
        %675 = vmatmul.bf16.gmra.mxu0 %v493
        %v676 = vpop.f32.mrf.mxu0
        %v677 = vadd.f32 %v628, %v676
        %v678 = vpop.f32.mrf.mxu0
        %v679 = vadd.f32 %v630, %v678
        %680 = vmatmul.bf16.gmra.mxu0 %v496
        %v681 = vpop.f32.mrf.mxu0
        %v682 = vadd.f32 %v633, %v681
        %v683 = vpop.f32.mrf.mxu0
        %v684 = vadd.f32 %v635, %v683
        %685 = vmatmul.bf16.gmra.mxu0 %v499
        %v686 = vpop.f32.mrf.mxu0
        %v687 = vadd.f32 %v638, %v686
        %v688 = vpop.f32.mrf.mxu0
        %v689 = vadd.f32 %v640, %v688
        %690 = vmatmul.bf16.gmra.mxu0 %v502
        %v691 = vpop.f32.mrf.mxu0
        %v692 = vadd.f32 %v643, %v691
        %v693 = vpop.f32.mrf.mxu0
        %v694 = vadd.f32 %v645, %v693
        %695 = vmatmul.bf16.gmra.mxu0 %v505
        %v696 = vpop.f32.mrf.mxu0
        %v697 = vadd.f32 %v648, %v696
        %v698 = vpop.f32.mrf.mxu0
        %v699 = vadd.f32 %v650, %v698
        %700 = vmatmul.bf16.gmra.mxu0 %v508
        %v701 = vpop.f32.mrf.mxu0
        %v702 = vadd.f32 %v653, %v701
        %v703 = vpop.f32.mrf.mxu0
        %v704 = vadd.f32 %v655, %v703
        %705 = vdwg.mxu0
        %v706 = vtanh.pop %v569
        %v707 = vtanh.pop %v667
        %v708 = vtanh.pop %v571
        %v709 = vtanh.pop %v669
        %v710 = vtanh.pop %v574
        %v711 = vtanh.pop %v672
        %v712 = vtanh.pop %v576
        %v713 = vtanh.pop %v674
        %v714 = vtanh.pop %v579
        %v715 = vtanh.pop %v677
        %v716 = vtanh.pop %v581
        %v717 = vtanh.pop %v679
        %v718 = vtanh.pop %v584
        %v719 = vtanh.pop %v682
        %v720 = vtanh.pop %v586
        %v721 = vtanh.pop %v684
        %v722 = vtanh.pop %v589
        %v723 = vtanh.pop %v687
        %v724 = vtanh.pop %v591
        %v725 = vtanh.pop %v689
        %v726 = vtanh.pop %v594
        %v727 = vtanh.pop %v692
        %v728 = vtanh.pop %v596
        %v729 = vtanh.pop %v694
        %v730 = vtanh.pop %v599
        %v731 = vtanh.pop %v697
        %v732 = vtanh.pop %v601
        %v733 = vtanh.pop %v699
        %v734 = vtanh.pop %v604
        %v735 = vtanh.pop %v702
        %v736 = vtanh.pop %v606
        %v737 = vtanh.pop %v704
        %v738 = vpack.c.bf16 %v708, %v706
        %v739 = vpack.c.bf16 %v709, %v707
        %v740 = vpack.c.bf16 %v712, %v710
        %v741 = vpack.c.bf16 %v713, %v711
        %v742 = vpack.c.bf16 %v716, %v714
        %v743 = vpack.c.bf16 %v717, %v715
        %v744 = vpack.c.bf16 %v720, %v718
        %v745 = vpack.c.bf16 %v721, %v719
        %v746 = vpack.c.bf16 %v724, %v722
        %v747 = vpack.c.bf16 %v725, %v723
        %v748 = vpack.c.bf16 %v728, %v726
        %v749 = vpack.c.bf16 %v729, %v727
        %v750 = vpack.c.bf16 %v732, %v730
        %v751 = vpack.c.bf16 %v733, %v731
        %v752 = vpack.c.bf16 %v736, %v734
        %v753 = vpack.c.bf16 %v737, %v735
        %v754 = vld [vmem:[#allocation2] sm:$0xff]
        %v755 = vld [vmem:[#allocation2 + $0x8] sm:$0xff]
        %v756 = vld [vmem:[#allocation2 + $0x10] sm:$0xff]
        %v757 = vld [vmem:[#allocation2 + $0x18] sm:$0xff]
        %v758 = vld [vmem:[#allocation2 + $0x20] sm:$0xff]
        %v759 = vld [vmem:[#allocation2 + $0x28] sm:$0xff]
        %v760 = vld [vmem:[#allocation2 + $0x30] sm:$0xff]
        %v761 = vld [vmem:[#allocation2 + $0x38] sm:$0xff]
        %v762 = vld [vmem:[#allocation2 + $0x40] sm:$0xff]
        %v763 = vld [vmem:[#allocation2 + $0x48] sm:$0xff]
        %v764 = vld [vmem:[#allocation2 + $0x50] sm:$0xff]
        %v765 = vld [vmem:[#allocation2 + $0x58] sm:$0xff]
        %v766 = vld [vmem:[#allocation2 + $0x60] sm:$0xff]
        %v767 = vld [vmem:[#allocation2 + $0x68] sm:$0xff]
        %v768 = vld [vmem:[#allocation2 + $0x70] sm:$0xff]
        %v769 = vld [vmem:[#allocation2 + $0x78] sm:$0xff]
        %v770 = vld [vmem:[#allocation2 + $0x80] sm:$0xff]
        %v771 = vld [vmem:[#allocation2 + $0x88] sm:$0xff]
        %v772 = vld [vmem:[#allocation2 + $0x90] sm:$0xff]
        %v773 = vld [vmem:[#allocation2 + $0x98] sm:$0xff]
        %v774 = vld [vmem:[#allocation2 + $0xa0] sm:$0xff]
        %v775 = vld [vmem:[#allocation2 + $0xa8] sm:$0xff]
        %v776 = vld [vmem:[#allocation2 + $0xb0] sm:$0xff]
        %v777 = vld [vmem:[#allocation2 + $0xb8] sm:$0xff]
        %v778 = vld [vmem:[#allocation2 + $0xc0] sm:$0xff]
        %v779 = vld [vmem:[#allocation2 + $0xc8] sm:$0xff]
        %v780 = vld [vmem:[#allocation2 + $0xd0] sm:$0xff]
        %v781 = vld [vmem:[#allocation2 + $0xd8] sm:$0xff]
        %v782 = vld [vmem:[#allocation2 + $0xe0] sm:$0xff]
        %v783 = vld [vmem:[#allocation2 + $0xe8] sm:$0xff]
        %v784 = vld [vmem:[#allocation2 + $0xf0] sm:$0xff]
        %v785 = vld [vmem:[#allocation2 + $0xf8] sm:$0xff]
        %v786 = vld [vmem:[#allocation2 + $0x100] sm:$0xff]
        %v787 = vld [vmem:[#allocation2 + $0x108] sm:$0xff]
        %v788 = vld [vmem:[#allocation2 + $0x110] sm:$0xff]
        %v789 = vld [vmem:[#allocation2 + $0x118] sm:$0xff]
        %v790 = vld [vmem:[#allocation2 + $0x120] sm:$0xff]
        %v791 = vld [vmem:[#allocation2 + $0x128] sm:$0xff]
        %v792 = vld [vmem:[#allocation2 + $0x130] sm:$0xff]
        %v793 = vld [vmem:[#allocation2 + $0x138] sm:$0xff]
        %v794 = vld [vmem:[#allocation2 + $0x140] sm:$0xff]
        %v795 = vld [vmem:[#allocation2 + $0x148] sm:$0xff]
        %v796 = vld [vmem:[#allocation2 + $0x150] sm:$0xff]
        %v797 = vld [vmem:[#allocation2 + $0x158] sm:$0xff]
        %v798 = vld [vmem:[#allocation2 + $0x160] sm:$0xff]
        %v799 = vld [vmem:[#allocation2 + $0x168] sm:$0xff]
        %v800 = vld [vmem:[#allocation2 + $0x170] sm:$0xff]
        %v801 = vld [vmem:[#allocation2 + $0x178] sm:$0xff]
        %v802 = vld [vmem:[#allocation2 + $0x180] sm:$0xff]
        %v803 = vld [vmem:[#allocation2 + $0x188] sm:$0xff]
        %v804 = vld [vmem:[#allocation2 + $0x190] sm:$0xff]
        %v805 = vld [vmem:[#allocation2 + $0x198] sm:$0xff]
        %v806 = vld [vmem:[#allocation2 + $0x1a0] sm:$0xff]
        %v807 = vld [vmem:[#allocation2 + $0x1a8] sm:$0xff]
        %v808 = vld [vmem:[#allocation2 + $0x1b0] sm:$0xff]
        %v809 = vld [vmem:[#allocation2 + $0x1b8] sm:$0xff]
        %v810 = vld [vmem:[#allocation2 + $0x1c0] sm:$0xff]
        %v811 = vld [vmem:[#allocation2 + $0x1c8] sm:$0xff]
        %v812 = vld [vmem:[#allocation2 + $0x1d0] sm:$0xff]
        %v813 = vld [vmem:[#allocation2 + $0x1d8] sm:$0xff]
        %v814 = vld [vmem:[#allocation2 + $0x1e0] sm:$0xff]
        %v815 = vld [vmem:[#allocation2 + $0x1e8] sm:$0xff]
        %v816 = vld [vmem:[#allocation2 + $0x1f0] sm:$0xff]
        %v817 = vld [vmem:[#allocation2 + $0x1f8] sm:$0xff]
        %v818 = vld [vmem:[%s4] sm:$0xf]
        %v820 = vperm.slane %v818, 0
        %v821 = vperm.slane %v818, 1
        %v822 = vperm.slane %v818, 2
        %v823 = vperm.slane %v818, 3
        %v892 = vunpack.c.l.b16 %v754
        %v893 = vunpack.c.h.b16 %v754
        %v894 = vunpack.c.l.b16 %v755
        %v895 = vunpack.c.h.b16 %v755
        %v896 = vunpack.c.l.b16 %v756
        %v897 = vunpack.c.h.b16 %v756
        %v898 = vunpack.c.l.b16 %v757
        %v899 = vunpack.c.h.b16 %v757
        %v900 = vunpack.c.l.b16 %v758
        %v901 = vunpack.c.h.b16 %v758
        %v902 = vunpack.c.l.b16 %v759
        %v903 = vunpack.c.h.b16 %v759
        %v904 = vunpack.c.l.b16 %v760
        %v905 = vunpack.c.h.b16 %v760
        %v906 = vunpack.c.l.b16 %v761
        %v907 = vunpack.c.h.b16 %v761
        %v908 = vunpack.c.l.b16 %v762
        %v909 = vunpack.c.h.b16 %v762
        %v910 = vunpack.c.l.b16 %v763
        %v911 = vunpack.c.h.b16 %v763
        %v912 = vunpack.c.l.b16 %v764
        %v913 = vunpack.c.h.b16 %v764
        %v914 = vunpack.c.l.b16 %v765
        %v915 = vunpack.c.h.b16 %v765
        %v916 = vunpack.c.l.b16 %v766
        %v917 = vunpack.c.h.b16 %v766
        %v918 = vunpack.c.l.b16 %v767
        %v919 = vunpack.c.h.b16 %v767
        %v920 = vunpack.c.l.b16 %v768
        %v921 = vunpack.c.h.b16 %v768
        %v922 = vunpack.c.l.b16 %v769
        %v923 = vunpack.c.h.b16 %v769
        %v924 = vunpack.c.l.b16 %v770
        %v925 = vunpack.c.h.b16 %v770
        %v926 = vunpack.c.l.b16 %v771
        %v927 = vunpack.c.h.b16 %v771
        %v928 = vunpack.c.l.b16 %v772
        %v929 = vunpack.c.h.b16 %v772
        %v930 = vunpack.c.l.b16 %v773
        %v931 = vunpack.c.h.b16 %v773
        %v932 = vunpack.c.l.b16 %v774
        %v933 = vunpack.c.h.b16 %v774
        %v934 = vunpack.c.l.b16 %v775
        %v935 = vunpack.c.h.b16 %v775
        %v936 = vunpack.c.l.b16 %v776
        %v937 = vunpack.c.h.b16 %v776
        %v938 = vunpack.c.l.b16 %v777
        %v939 = vunpack.c.h.b16 %v777
        %v940 = vunpack.c.l.b16 %v778
        %v941 = vunpack.c.h.b16 %v778
        %v942 = vunpack.c.l.b16 %v779
        %v943 = vunpack.c.h.b16 %v779
        %v944 = vunpack.c.l.b16 %v780
        %v945 = vunpack.c.h.b16 %v780
        %v946 = vunpack.c.l.b16 %v781
        %v947 = vunpack.c.h.b16 %v781
        %v948 = vunpack.c.l.b16 %v782
        %v949 = vunpack.c.h.b16 %v782
        %v950 = vunpack.c.l.b16 %v783
        %v951 = vunpack.c.h.b16 %v783
        %v952 = vunpack.c.l.b16 %v784
        %v953 = vunpack.c.h.b16 %v784
        %v954 = vunpack.c.l.b16 %v785
        %v955 = vunpack.c.h.b16 %v785
        %v956 = vunpack.c.l.b16 %v786
        %v957 = vunpack.c.h.b16 %v786
        %v958 = vunpack.c.l.b16 %v787
        %v959 = vunpack.c.h.b16 %v787
        %v960 = vunpack.c.l.b16 %v788
        %v961 = vunpack.c.h.b16 %v788
        %v962 = vunpack.c.l.b16 %v789
        %v963 = vunpack.c.h.b16 %v789
        %v964 = vunpack.c.l.b16 %v790
        %v965 = vunpack.c.h.b16 %v790
        %v966 = vunpack.c.l.b16 %v791
        %v967 = vunpack.c.h.b16 %v791
        %v968 = vunpack.c.l.b16 %v792
        %v969 = vunpack.c.h.b16 %v792
        %v970 = vunpack.c.l.b16 %v793
        %v971 = vunpack.c.h.b16 %v793
        %v972 = vunpack.c.l.b16 %v794
        %v973 = vunpack.c.h.b16 %v794
        %v974 = vunpack.c.l.b16 %v795
        %v975 = vunpack.c.h.b16 %v795
        %v976 = vunpack.c.l.b16 %v796
        %v977 = vunpack.c.h.b16 %v796
        %v978 = vunpack.c.l.b16 %v797
        %v979 = vunpack.c.h.b16 %v797
        %v980 = vunpack.c.l.b16 %v798
        %v981 = vunpack.c.h.b16 %v798
        %v982 = vunpack.c.l.b16 %v799
        %v983 = vunpack.c.h.b16 %v799
        %v984 = vunpack.c.l.b16 %v800
        %v985 = vunpack.c.h.b16 %v800
        %v986 = vunpack.c.l.b16 %v801
        %v987 = vunpack.c.h.b16 %v801
        %v988 = vunpack.c.l.b16 %v802
        %v989 = vunpack.c.h.b16 %v802
        %v990 = vunpack.c.l.b16 %v803
        %v991 = vunpack.c.h.b16 %v803
        %v992 = vunpack.c.l.b16 %v804
        %v993 = vunpack.c.h.b16 %v804
        %v994 = vunpack.c.l.b16 %v805
        %v995 = vunpack.c.h.b16 %v805
        %v996 = vunpack.c.l.b16 %v806
        %v997 = vunpack.c.h.b16 %v806
        %v998 = vunpack.c.l.b16 %v807
        %v999 = vunpack.c.h.b16 %v807
        %v1000 = vunpack.c.l.b16 %v808
        %v1001 = vunpack.c.h.b16 %v808
        %v1002 = vunpack.c.l.b16 %v809
        %v1003 = vunpack.c.h.b16 %v809
        %v1004 = vunpack.c.l.b16 %v810
        %v1005 = vunpack.c.h.b16 %v810
        %v1006 = vunpack.c.l.b16 %v811
        %v1007 = vunpack.c.h.b16 %v811
        %v1008 = vunpack.c.l.b16 %v812
        %v1009 = vunpack.c.h.b16 %v812
        %v1010 = vunpack.c.l.b16 %v813
        %v1011 = vunpack.c.h.b16 %v813
        %v1012 = vunpack.c.l.b16 %v814
        %v1013 = vunpack.c.h.b16 %v814
        %v1014 = vunpack.c.l.b16 %v815
        %v1015 = vunpack.c.h.b16 %v815
        %v1016 = vunpack.c.l.b16 %v816
        %v1017 = vunpack.c.h.b16 %v816
        %v1018 = vunpack.c.l.b16 %v817
        %v1019 = vunpack.c.h.b16 %v817
        %v1020 = vpack.c.b16 %v896, %v892
        %v1021 = vpack.c.b16 %v897, %v893
        %v1022 = vpack.c.b16 %v898, %v894
        %v1023 = vpack.c.b16 %v899, %v895
        %v1024 = vpack.c.b16 %v904, %v900
        %v1025 = vpack.c.b16 %v905, %v901
        %v1026 = vpack.c.b16 %v906, %v902
        %v1027 = vpack.c.b16 %v907, %v903
        %v1028 = vpack.c.b16 %v912, %v908
        %v1029 = vpack.c.b16 %v913, %v909
        %v1030 = vpack.c.b16 %v914, %v910
        %v1031 = vpack.c.b16 %v915, %v911
        %v1032 = vpack.c.b16 %v920, %v916
        %v1033 = vpack.c.b16 %v921, %v917
        %v1034 = vpack.c.b16 %v922, %v918
        %v1035 = vpack.c.b16 %v923, %v919
        %v1036 = vpack.c.b16 %v928, %v924
        %v1037 = vpack.c.b16 %v929, %v925
        %v1038 = vpack.c.b16 %v930, %v926
        %v1039 = vpack.c.b16 %v931, %v927
        %v1040 = vpack.c.b16 %v936, %v932
        %v1041 = vpack.c.b16 %v937, %v933
        %v1042 = vpack.c.b16 %v938, %v934
        %v1043 = vpack.c.b16 %v939, %v935
        %v1044 = vpack.c.b16 %v944, %v940
        %v1045 = vpack.c.b16 %v945, %v941
        %v1046 = vpack.c.b16 %v946, %v942
        %v1047 = vpack.c.b16 %v947, %v943
        %v1048 = vpack.c.b16 %v952, %v948
        %v1049 = vpack.c.b16 %v953, %v949
        %v1050 = vpack.c.b16 %v954, %v950
        %v1051 = vpack.c.b16 %v955, %v951
        %v1052 = vpack.c.b16 %v960, %v956
        %v1053 = vpack.c.b16 %v961, %v957
        %v1054 = vpack.c.b16 %v962, %v958
        %v1055 = vpack.c.b16 %v963, %v959
        %v1056 = vpack.c.b16 %v968, %v964
        %v1057 = vpack.c.b16 %v969, %v965
        %v1058 = vpack.c.b16 %v970, %v966
        %v1059 = vpack.c.b16 %v971, %v967
        %v1060 = vpack.c.b16 %v976, %v972
        %v1061 = vpack.c.b16 %v977, %v973
        %v1062 = vpack.c.b16 %v978, %v974
        %v1063 = vpack.c.b16 %v979, %v975
        %v1064 = vpack.c.b16 %v984, %v980
        %v1065 = vpack.c.b16 %v985, %v981
        %v1066 = vpack.c.b16 %v986, %v982
        %v1067 = vpack.c.b16 %v987, %v983
        %v1068 = vpack.c.b16 %v992, %v988
        %v1069 = vpack.c.b16 %v993, %v989
        %v1070 = vpack.c.b16 %v994, %v990
        %v1071 = vpack.c.b16 %v995, %v991
        %v1072 = vpack.c.b16 %v1000, %v996
        %v1073 = vpack.c.b16 %v1001, %v997
        %v1074 = vpack.c.b16 %v1002, %v998
        %v1075 = vpack.c.b16 %v1003, %v999
        %v1076 = vpack.c.b16 %v1008, %v1004
        %v1077 = vpack.c.b16 %v1009, %v1005
        %v1078 = vpack.c.b16 %v1010, %v1006
        %v1079 = vpack.c.b16 %v1011, %v1007
        %v1080 = vpack.c.b16 %v1016, %v1012
        %v1081 = vpack.c.b16 %v1017, %v1013
        %v1082 = vpack.c.b16 %v1018, %v1014
        %v1083 = vpack.c.b16 %v1019, %v1015
        %1148 = vmatpush.bf16.msra.mxu0 %v1048
        %1149 = vmatpush.bf16.msra.mxu0 %v1044
        %1150 = vmatpush.bf16.msra.mxu0 %v1040
        %1151 = vmatpush.bf16.msra.mxu0 %v1036
        %1152 = vmatpush.bf16.msra.mxu0 %v1032
        %1153 = vmatpush.bf16.msra.mxu0 %v1028
        %1154 = vmatpush.bf16.msra.mxu0 %v1024
        %1155 = vmatpush.bf16.msra.mxu0 %v1020
        %1156 = vmatmul.bf16.gmra.mxu0 %v738
        %v1157 = vpop.f32.mrf.mxu0
        %v1158 = vadd.f32 %v820, %v1157
        %v1159 = vpop.f32.mrf.mxu0
        %v1160 = vadd.f32 %v820, %v1159
        %1161 = vmatmul.bf16.gmra.mxu0 %v740
        %v1162 = vpop.f32.mrf.mxu0
        %v1163 = vadd.f32 %v820, %v1162
        %v1164 = vpop.f32.mrf.mxu0
        %v1165 = vadd.f32 %v820, %v1164
        %1166 = vmatmul.bf16.gmra.mxu0 %v742
        %v1167 = vpop.f32.mrf.mxu0
        %v1168 = vadd.f32 %v820, %v1167
        %v1169 = vpop.f32.mrf.mxu0
        %v1170 = vadd.f32 %v820, %v1169
        %1171 = vmatmul.bf16.gmra.mxu0 %v744
        %v1172 = vpop.f32.mrf.mxu0
        %v1173 = vadd.f32 %v820, %v1172
        %v1174 = vpop.f32.mrf.mxu0
        %v1175 = vadd.f32 %v820, %v1174
        %1176 = vmatmul.bf16.gmra.mxu0 %v746
        %v1177 = vpop.f32.mrf.mxu0
        %v1178 = vadd.f32 %v820, %v1177
        %v1179 = vpop.f32.mrf.mxu0
        %v1180 = vadd.f32 %v820, %v1179
        %1181 = vmatmul.bf16.gmra.mxu0 %v748
        %v1182 = vpop.f32.mrf.mxu0
        %v1183 = vadd.f32 %v820, %v1182
        %v1184 = vpop.f32.mrf.mxu0
        %v1185 = vadd.f32 %v820, %v1184
        %1186 = vmatmul.bf16.gmra.mxu0 %v750
        %v1187 = vpop.f32.mrf.mxu0
        %v1188 = vadd.f32 %v820, %v1187
        %v1189 = vpop.f32.mrf.mxu0
        %v1190 = vadd.f32 %v820, %v1189
        %1191 = vmatmul.bf16.gmra.mxu0 %v752
        %v1192 = vpop.f32.mrf.mxu0
        %v1193 = vadd.f32 %v820, %v1192
        %v1194 = vpop.f32.mrf.mxu0
        %v1195 = vadd.f32 %v820, %v1194
        %1196 = vdwg.mxu0
        %1197 = vmatpush.bf16.msra.mxu0 %v1080
        %1198 = vmatpush.bf16.msra.mxu0 %v1076
        %1199 = vmatpush.bf16.msra.mxu0 %v1072
        %1200 = vmatpush.bf16.msra.mxu0 %v1068
        %1201 = vmatpush.bf16.msra.mxu0 %v1064
        %1202 = vmatpush.bf16.msra.mxu0 %v1060
        %1203 = vmatpush.bf16.msra.mxu0 %v1056
        %1204 = vmatpush.bf16.msra.mxu0 %v1052
        %1205 = vmatmul.bf16.gmra.mxu0 %v739
        %v1206 = vpop.f32.mrf.mxu0
        %v1207 = vadd.f32 %v1158, %v1206
        %v1208 = vpop.f32.mrf.mxu0
        %v1209 = vadd.f32 %v1160, %v1208
        %1210 = vmatmul.bf16.gmra.mxu0 %v741
        %v1211 = vpop.f32.mrf.mxu0
        %v1212 = vadd.f32 %v1163, %v1211
        %v1213 = vpop.f32.mrf.mxu0
        %v1214 = vadd.f32 %v1165, %v1213
        %1215 = vmatmul.bf16.gmra.mxu0 %v743
        %v1216 = vpop.f32.mrf.mxu0
        %v1217 = vadd.f32 %v1168, %v1216
        %v1218 = vpop.f32.mrf.mxu0
        %v1219 = vadd.f32 %v1170, %v1218
        %1220 = vmatmul.bf16.gmra.mxu0 %v745
        %v1221 = vpop.f32.mrf.mxu0
        %v1222 = vadd.f32 %v1173, %v1221
        %v1223 = vpop.f32.mrf.mxu0
        %v1224 = vadd.f32 %v1175, %v1223
        %1225 = vmatmul.bf16.gmra.mxu0 %v747
        %v1226 = vpop.f32.mrf.mxu0
        %v1227 = vadd.f32 %v1178, %v1226
        %v1228 = vpop.f32.mrf.mxu0
        %v1229 = vadd.f32 %v1180, %v1228
        %1230 = vmatmul.bf16.gmra.mxu0 %v749
        %v1231 = vpop.f32.mrf.mxu0
        %v1232 = vadd.f32 %v1183, %v1231
        %v1233 = vpop.f32.mrf.mxu0
        %v1234 = vadd.f32 %v1185, %v1233
        %1235 = vmatmul.bf16.gmra.mxu0 %v751
        %v1236 = vpop.f32.mrf.mxu0
        %v1237 = vadd.f32 %v1188, %v1236
        %v1238 = vpop.f32.mrf.mxu0
        %v1239 = vadd.f32 %v1190, %v1238
        %1240 = vmatmul.bf16.gmra.mxu0 %v753
        %v1241 = vpop.f32.mrf.mxu0
        %v1242 = vadd.f32 %v1193, %v1241
        %v1243 = vpop.f32.mrf.mxu0
        %v1244 = vadd.f32 %v1195, %v1243
        %1245 = vdwg.mxu0
        %1246 = vmatpush.bf16.msra.mxu0 %v1049
        %1247 = vmatpush.bf16.msra.mxu0 %v1045
        %1248 = vmatpush.bf16.msra.mxu0 %v1041
        %1249 = vmatpush.bf16.msra.mxu0 %v1037
        %1250 = vmatpush.bf16.msra.mxu0 %v1033
        %1251 = vmatpush.bf16.msra.mxu0 %v1029
        %1252 = vmatpush.bf16.msra.mxu0 %v1025
        %1253 = vmatpush.bf16.msra.mxu0 %v1021
        %1254 = vmatmul.bf16.gmra.mxu0 %v738
        %v1255 = vpop.f32.mrf.mxu0
        %v1256 = vadd.f32 %v821, %v1255
        %v1257 = vpop.f32.mrf.mxu0
        %v1258 = vadd.f32 %v821, %v1257
        %1259 = vmatmul.bf16.gmra.mxu0 %v740
        %v1260 = vpop.f32.mrf.mxu0
        %v1261 = vadd.f32 %v821, %v1260
        %v1262 = vpop.f32.mrf.mxu0
        %v1263 = vadd.f32 %v821, %v1262
        %1264 = vmatmul.bf16.gmra.mxu0 %v742
        %v1265 = vpop.f32.mrf.mxu0
        %v1266 = vadd.f32 %v821, %v1265
        %v1267 = vpop.f32.mrf.mxu0
        %v1268 = vadd.f32 %v821, %v1267
        %1269 = vmatmul.bf16.gmra.mxu0 %v744
        %v1270 = vpop.f32.mrf.mxu0
        %v1271 = vadd.f32 %v821, %v1270
        %v1272 = vpop.f32.mrf.mxu0
        %v1273 = vadd.f32 %v821, %v1272
        %1274 = vmatmul.bf16.gmra.mxu0 %v746
        %v1275 = vpop.f32.mrf.mxu0
        %v1276 = vadd.f32 %v821, %v1275
        %v1277 = vpop.f32.mrf.mxu0
        %v1278 = vadd.f32 %v821, %v1277
        %1279 = vmatmul.bf16.gmra.mxu0 %v748
        %v1280 = vpop.f32.mrf.mxu0
        %v1281 = vadd.f32 %v821, %v1280
        %v1282 = vpop.f32.mrf.mxu0
        %v1283 = vadd.f32 %v821, %v1282
        %1284 = vmatmul.bf16.gmra.mxu0 %v750
        %v1285 = vpop.f32.mrf.mxu0
        %v1286 = vadd.f32 %v821, %v1285
        %v1287 = vpop.f32.mrf.mxu0
        %v1288 = vadd.f32 %v821, %v1287
        %1289 = vmatmul.bf16.gmra.mxu0 %v752
        %v1290 = vpop.f32.mrf.mxu0
        %v1291 = vadd.f32 %v821, %v1290
        %v1292 = vpop.f32.mrf.mxu0
        %v1293 = vadd.f32 %v821, %v1292
        %1294 = vdwg.mxu0
        %1295 = vmatpush.bf16.msra.mxu0 %v1081
        %1296 = vmatpush.bf16.msra.mxu0 %v1077
        %1297 = vmatpush.bf16.msra.mxu0 %v1073
        %1298 = vmatpush.bf16.msra.mxu0 %v1069
        %1299 = vmatpush.bf16.msra.mxu0 %v1065
        %1300 = vmatpush.bf16.msra.mxu0 %v1061
        %1301 = vmatpush.bf16.msra.mxu0 %v1057
        %1302 = vmatpush.bf16.msra.mxu0 %v1053
        %1303 = vmatmul.bf16.gmra.mxu0 %v739
        %v1304 = vpop.f32.mrf.mxu0
        %v1305 = vadd.f32 %v1256, %v1304
        %v1306 = vpop.f32.mrf.mxu0
        %v1307 = vadd.f32 %v1258, %v1306
        %1308 = vmatmul.bf16.gmra.mxu0 %v741
        %v1309 = vpop.f32.mrf.mxu0
        %v1310 = vadd.f32 %v1261, %v1309
        %v1311 = vpop.f32.mrf.mxu0
        %v1312 = vadd.f32 %v1263, %v1311
        %1313 = vmatmul.bf16.gmra.mxu0 %v743
        %v1314 = vpop.f32.mrf.mxu0
        %v1315 = vadd.f32 %v1266, %v1314
        %v1316 = vpop.f32.mrf.mxu0
        %v1317 = vadd.f32 %v1268, %v1316
        %1318 = vmatmul.bf16.gmra.mxu0 %v745
        %v1319 = vpop.f32.mrf.mxu0
        %v1320 = vadd.f32 %v1271, %v1319
        %v1321 = vpop.f32.mrf.mxu0
        %v1322 = vadd.f32 %v1273, %v1321
        %1323 = vmatmul.bf16.gmra.mxu0 %v747
        %v1324 = vpop.f32.mrf.mxu0
        %v1325 = vadd.f32 %v1276, %v1324
        %v1326 = vpop.f32.mrf.mxu0
        %v1327 = vadd.f32 %v1278, %v1326
        %1328 = vmatmul.bf16.gmra.mxu0 %v749
        %v1329 = vpop.f32.mrf.mxu0
        %v1330 = vadd.f32 %v1281, %v1329
        %v1331 = vpop.f32.mrf.mxu0
        %v1332 = vadd.f32 %v1283, %v1331
        %1333 = vmatmul.bf16.gmra.mxu0 %v751
        %v1334 = vpop.f32.mrf.mxu0
        %v1335 = vadd.f32 %v1286, %v1334
        %v1336 = vpop.f32.mrf.mxu0
        %v1337 = vadd.f32 %v1288, %v1336
        %1338 = vmatmul.bf16.gmra.mxu0 %v753
        %v1339 = vpop.f32.mrf.mxu0
        %v1340 = vadd.f32 %v1291, %v1339
        %v1341 = vpop.f32.mrf.mxu0
        %v1342 = vadd.f32 %v1293, %v1341
        %1343 = vdwg.mxu0
        %1344 = vmatpush.bf16.msra.mxu0 %v1050
        %1345 = vmatpush.bf16.msra.mxu0 %v1046
        %1346 = vmatpush.bf16.msra.mxu0 %v1042
        %1347 = vmatpush.bf16.msra.mxu0 %v1038
        %1348 = vmatpush.bf16.msra.mxu0 %v1034
        %1349 = vmatpush.bf16.msra.mxu0 %v1030
        %1350 = vmatpush.bf16.msra.mxu0 %v1026
        %1351 = vmatpush.bf16.msra.mxu0 %v1022
        %1352 = vmatmul.bf16.gmra.mxu0 %v738
        %v1353 = vpop.f32.mrf.mxu0
        %v1354 = vadd.f32 %v822, %v1353
        %v1355 = vpop.f32.mrf.mxu0
        %v1356 = vadd.f32 %v822, %v1355
        %1357 = vmatmul.bf16.gmra.mxu0 %v740
        %v1358 = vpop.f32.mrf.mxu0
        %v1359 = vadd.f32 %v822, %v1358
        %v1360 = vpop.f32.mrf.mxu0
        %v1361 = vadd.f32 %v822, %v1360
        %1362 = vmatmul.bf16.gmra.mxu0 %v742
        %v1363 = vpop.f32.mrf.mxu0
        %v1364 = vadd.f32 %v822, %v1363
        %v1365 = vpop.f32.mrf.mxu0
        %v1366 = vadd.f32 %v822, %v1365
        %1367 = vmatmul.bf16.gmra.mxu0 %v744
        %v1368 = vpop.f32.mrf.mxu0
        %v1369 = vadd.f32 %v822, %v1368
        %v1370 = vpop.f32.mrf.mxu0
        %v1371 = vadd.f32 %v822, %v1370
        %1372 = vmatmul.bf16.gmra.mxu0 %v746
        %v1373 = vpop.f32.mrf.mxu0
        %v1374 = vadd.f32 %v822, %v1373
        %v1375 = vpop.f32.mrf.mxu0
        %v1376 = vadd.f32 %v822, %v1375
        %1377 = vmatmul.bf16.gmra.mxu0 %v748
        %v1378 = vpop.f32.mrf.mxu0
        %v1379 = vadd.f32 %v822, %v1378
        %v1380 = vpop.f32.mrf.mxu0
        %v1381 = vadd.f32 %v822, %v1380
        %1382 = vmatmul.bf16.gmra.mxu0 %v750
        %v1383 = vpop.f32.mrf.mxu0
        %v1384 = vadd.f32 %v822, %v1383
        %v1385 = vpop.f32.mrf.mxu0
        %v1386 = vadd.f32 %v822, %v1385
        %1387 = vmatmul.bf16.gmra.mxu0 %v752
        %v1388 = vpop.f32.mrf.mxu0
        %v1389 = vadd.f32 %v822, %v1388
        %v1390 = vpop.f32.mrf.mxu0
        %v1391 = vadd.f32 %v822, %v1390
        %1392 = vdwg.mxu0
        %1393 = vmatpush.bf16.msra.mxu0 %v1082
        %1394 = vmatpush.bf16.msra.mxu0 %v1078
        %1395 = vmatpush.bf16.msra.mxu0 %v1074
        %1396 = vmatpush.bf16.msra.mxu0 %v1070
        %1397 = vmatpush.bf16.msra.mxu0 %v1066
        %1398 = vmatpush.bf16.msra.mxu0 %v1062
        %1399 = vmatpush.bf16.msra.mxu0 %v1058
        %1400 = vmatpush.bf16.msra.mxu0 %v1054
        %1401 = vmatmul.bf16.gmra.mxu0 %v739
        %v1402 = vpop.f32.mrf.mxu0
        %v1403 = vadd.f32 %v1354, %v1402
        %v1404 = vpop.f32.mrf.mxu0
        %v1405 = vadd.f32 %v1356, %v1404
        %1406 = vmatmul.bf16.gmra.mxu0 %v741
        %v1407 = vpop.f32.mrf.mxu0
        %v1408 = vadd.f32 %v1359, %v1407
        %v1409 = vpop.f32.mrf.mxu0
        %v1410 = vadd.f32 %v1361, %v1409
        %1411 = vmatmul.bf16.gmra.mxu0 %v743
        %v1412 = vpop.f32.mrf.mxu0
        %v1413 = vadd.f32 %v1364, %v1412
        %v1414 = vpop.f32.mrf.mxu0
        %v1415 = vadd.f32 %v1366, %v1414
        %1416 = vmatmul.bf16.gmra.mxu0 %v745
        %v1417 = vpop.f32.mrf.mxu0
        %v1418 = vadd.f32 %v1369, %v1417
        %v1419 = vpop.f32.mrf.mxu0
        %v1420 = vadd.f32 %v1371, %v1419
        %1421 = vmatmul.bf16.gmra.mxu0 %v747
        %v1422 = vpop.f32.mrf.mxu0
        %v1423 = vadd.f32 %v1374, %v1422
        %v1424 = vpop.f32.mrf.mxu0
        %v1425 = vadd.f32 %v1376, %v1424
        %1426 = vmatmul.bf16.gmra.mxu0 %v749
        %v1427 = vpop.f32.mrf.mxu0
        %v1428 = vadd.f32 %v1379, %v1427
        %v1429 = vpop.f32.mrf.mxu0
        %v1430 = vadd.f32 %v1381, %v1429
        %1431 = vmatmul.bf16.gmra.mxu0 %v751
        %v1432 = vpop.f32.mrf.mxu0
        %v1433 = vadd.f32 %v1384, %v1432
        %v1434 = vpop.f32.mrf.mxu0
        %v1435 = vadd.f32 %v1386, %v1434
        %1436 = vmatmul.bf16.gmra.mxu0 %v753
        %v1437 = vpop.f32.mrf.mxu0
        %v1438 = vadd.f32 %v1389, %v1437
        %v1439 = vpop.f32.mrf.mxu0
        %v1440 = vadd.f32 %v1391, %v1439
        %1441 = vdwg.mxu0
        %1442 = vmatpush.bf16.msra.mxu0 %v1051
        %1443 = vmatpush.bf16.msra.mxu0 %v1047
        %1444 = vmatpush.bf16.msra.mxu0 %v1043
        %1445 = vmatpush.bf16.msra.mxu0 %v1039
        %1446 = vmatpush.bf16.msra.mxu0 %v1035
        %1447 = vmatpush.bf16.msra.mxu0 %v1031
        %1448 = vmatpush.bf16.msra.mxu0 %v1027
        %1449 = vmatpush.bf16.msra.mxu0 %v1023
        %1450 = vmatmul.bf16.gmra.mxu0 %v738
        %v1451 = vpop.f32.mrf.mxu0
        %v1452 = vadd.f32 %v823, %v1451
        %v1453 = vpop.f32.mrf.mxu0
        %v1454 = vadd.f32 %v823, %v1453
        %1455 = vmatmul.bf16.gmra.mxu0 %v740
        %v1456 = vpop.f32.mrf.mxu0
        %v1457 = vadd.f32 %v823, %v1456
        %v1458 = vpop.f32.mrf.mxu0
        %v1459 = vadd.f32 %v823, %v1458
        %1460 = vmatmul.bf16.gmra.mxu0 %v742
        %v1461 = vpop.f32.mrf.mxu0
        %v1462 = vadd.f32 %v823, %v1461
        %v1463 = vpop.f32.mrf.mxu0
        %v1464 = vadd.f32 %v823, %v1463
        %1465 = vmatmul.bf16.gmra.mxu0 %v744
        %v1466 = vpop.f32.mrf.mxu0
        %v1467 = vadd.f32 %v823, %v1466
        %v1468 = vpop.f32.mrf.mxu0
        %v1469 = vadd.f32 %v823, %v1468
        %1470 = vmatmul.bf16.gmra.mxu0 %v746
        %v1471 = vpop.f32.mrf.mxu0
        %v1472 = vadd.f32 %v823, %v1471
        %v1473 = vpop.f32.mrf.mxu0
        %v1474 = vadd.f32 %v823, %v1473
        %1475 = vmatmul.bf16.gmra.mxu0 %v748
        %v1476 = vpop.f32.mrf.mxu0
        %v1477 = vadd.f32 %v823, %v1476
        %v1478 = vpop.f32.mrf.mxu0
        %v1479 = vadd.f32 %v823, %v1478
        %1480 = vmatmul.bf16.gmra.mxu0 %v750
        %v1481 = vpop.f32.mrf.mxu0
        %v1482 = vadd.f32 %v823, %v1481
        %v1483 = vpop.f32.mrf.mxu0
        %v1484 = vadd.f32 %v823, %v1483
        %1485 = vmatmul.bf16.gmra.mxu0 %v752
        %v1486 = vpop.f32.mrf.mxu0
        %v1487 = vadd.f32 %v823, %v1486
        %v1488 = vpop.f32.mrf.mxu0
        %v1489 = vadd.f32 %v823, %v1488
        %1490 = vdwg.mxu0
        %1491 = vmatpush.bf16.msra.mxu0 %v1083
        %1492 = vmatpush.bf16.msra.mxu0 %v1079
        %1493 = vmatpush.bf16.msra.mxu0 %v1075
        %1494 = vmatpush.bf16.msra.mxu0 %v1071
        %1495 = vmatpush.bf16.msra.mxu0 %v1067
        %1496 = vmatpush.bf16.msra.mxu0 %v1063
        %1497 = vmatpush.bf16.msra.mxu0 %v1059
        %1498 = vmatpush.bf16.msra.mxu0 %v1055
        %1499 = vmatmul.bf16.gmra.mxu0 %v739
        %v1500 = vpop.f32.mrf.mxu0
        %v1501 = vadd.f32 %v1452, %v1500
        %v1502 = vpop.f32.mrf.mxu0
        %v1503 = vadd.f32 %v1454, %v1502
        %1504 = vmatmul.bf16.gmra.mxu0 %v741
        %v1505 = vpop.f32.mrf.mxu0
        %v1506 = vadd.f32 %v1457, %v1505
        %v1507 = vpop.f32.mrf.mxu0
        %v1508 = vadd.f32 %v1459, %v1507
        %1509 = vmatmul.bf16.gmra.mxu0 %v743
        %v1510 = vpop.f32.mrf.mxu0
        %v1511 = vadd.f32 %v1462, %v1510
        %v1512 = vpop.f32.mrf.mxu0
        %v1513 = vadd.f32 %v1464, %v1512
        %1514 = vmatmul.bf16.gmra.mxu0 %v745
        %v1515 = vpop.f32.mrf.mxu0
        %v1516 = vadd.f32 %v1467, %v1515
        %v1517 = vpop.f32.mrf.mxu0
        %v1518 = vadd.f32 %v1469, %v1517
        %1519 = vmatmul.bf16.gmra.mxu0 %v747
        %v1520 = vpop.f32.mrf.mxu0
        %v1521 = vadd.f32 %v1472, %v1520
        %v1522 = vpop.f32.mrf.mxu0
        %v1523 = vadd.f32 %v1474, %v1522
        %1524 = vmatmul.bf16.gmra.mxu0 %v749
        %v1525 = vpop.f32.mrf.mxu0
        %v1526 = vadd.f32 %v1477, %v1525
        %v1527 = vpop.f32.mrf.mxu0
        %v1528 = vadd.f32 %v1479, %v1527
        %1529 = vmatmul.bf16.gmra.mxu0 %v751
        %v1530 = vpop.f32.mrf.mxu0
        %v1531 = vadd.f32 %v1482, %v1530
        %v1532 = vpop.f32.mrf.mxu0
        %v1533 = vadd.f32 %v1484, %v1532
        %1534 = vmatmul.bf16.gmra.mxu0 %v753
        %v1535 = vpop.f32.mrf.mxu0
        %v1536 = vadd.f32 %v1487, %v1535
        %v1537 = vpop.f32.mrf.mxu0
        %v1538 = vadd.f32 %v1489, %v1537
        %1539 = vdwg.mxu0
        %v1540 = vmax.f32 %v1207, %v1305
        %v1541 = vmax.f32 %v1540, %v1403
        %v1542 = vmax.f32 %v1541, %v1501
        %1543 = vmax.xlane.f32.xlu0 %v1542
        %v1544 = vpop.xlane.xlu0 %1543
        %v1545 = vmax.f32 %v1209, %v1307
        %v1546 = vmax.f32 %v1545, %v1405
        %v1547 = vmax.f32 %v1546, %v1503
        %1548 = vmax.xlane.f32.xlu0 %v1547
        %v1549 = vpop.xlane.xlu0 %1548
        %v1550 = vmax.f32 %v1212, %v1310
        %v1551 = vmax.f32 %v1550, %v1408
        %v1552 = vmax.f32 %v1551, %v1506
        %1553 = vmax.xlane.f32.xlu0 %v1552
        %v1554 = vpop.xlane.xlu0 %1553
        %v1555 = vmax.f32 %v1214, %v1312
        %v1556 = vmax.f32 %v1555, %v1410
        %v1557 = vmax.f32 %v1556, %v1508
        %1558 = vmax.xlane.f32.xlu0 %v1557
        %v1559 = vpop.xlane.xlu0 %1558
        %v1560 = vmax.f32 %v1217, %v1315
        %v1561 = vmax.f32 %v1560, %v1413
        %v1562 = vmax.f32 %v1561, %v1511
        %1563 = vmax.xlane.f32.xlu0 %v1562
        %v1564 = vpop.xlane.xlu0 %1563
        %v1565 = vmax.f32 %v1219, %v1317
        %v1566 = vmax.f32 %v1565, %v1415
        %v1567 = vmax.f32 %v1566, %v1513
        %1568 = vmax.xlane.f32.xlu0 %v1567
        %v1569 = vpop.xlane.xlu0 %1568
        %v1570 = vmax.f32 %v1222, %v1320
        %v1571 = vmax.f32 %v1570, %v1418
        %v1572 = vmax.f32 %v1571, %v1516
        %1573 = vmax.xlane.f32.xlu0 %v1572
        %v1574 = vpop.xlane.xlu0 %1573
        %v1575 = vmax.f32 %v1224, %v1322
        %v1576 = vmax.f32 %v1575, %v1420
        %v1577 = vmax.f32 %v1576, %v1518
        %1578 = vmax.xlane.f32.xlu0 %v1577
        %v1579 = vpop.xlane.xlu0 %1578
        %v1580 = vmax.f32 %v1227, %v1325
        %v1581 = vmax.f32 %v1580, %v1423
        %v1582 = vmax.f32 %v1581, %v1521
        %1583 = vmax.xlane.f32.xlu0 %v1582
        %v1584 = vpop.xlane.xlu0 %1583
        %v1585 = vmax.f32 %v1229, %v1327
        %v1586 = vmax.f32 %v1585, %v1425
        %v1587 = vmax.f32 %v1586, %v1523
        %1588 = vmax.xlane.f32.xlu0 %v1587
        %v1589 = vpop.xlane.xlu0 %1588
        %v1590 = vmax.f32 %v1232, %v1330
        %v1591 = vmax.f32 %v1590, %v1428
        %v1592 = vmax.f32 %v1591, %v1526
        %1593 = vmax.xlane.f32.xlu0 %v1592
        %v1594 = vpop.xlane.xlu0 %1593
        %v1595 = vmax.f32 %v1234, %v1332
        %v1596 = vmax.f32 %v1595, %v1430
        %v1597 = vmax.f32 %v1596, %v1528
        %1598 = vmax.xlane.f32.xlu0 %v1597
        %v1599 = vpop.xlane.xlu0 %1598
        %v1600 = vmax.f32 %v1237, %v1335
        %v1601 = vmax.f32 %v1600, %v1433
        %v1602 = vmax.f32 %v1601, %v1531
        %1603 = vmax.xlane.f32.xlu0 %v1602
        %v1604 = vpop.xlane.xlu0 %1603
        %v1605 = vmax.f32 %v1239, %v1337
        %v1606 = vmax.f32 %v1605, %v1435
        %v1607 = vmax.f32 %v1606, %v1533
        %1608 = vmax.xlane.f32.xlu0 %v1607
        %v1609 = vpop.xlane.xlu0 %1608
        %v1610 = vmax.f32 %v1242, %v1340
        %v1611 = vmax.f32 %v1610, %v1438
        %v1612 = vmax.f32 %v1611, %v1536
        %1613 = vmax.xlane.f32.xlu0 %v1612
        %v1614 = vpop.xlane.xlu0 %1613
        %v1615 = vmax.f32 %v1244, %v1342
        %v1616 = vmax.f32 %v1615, %v1440
        %v1617 = vmax.f32 %v1616, %v1538
        %1618 = vmax.xlane.f32.xlu0 %v1617
        %v1619 = vpop.xlane.xlu0 %1618
        %v1620 = vsub.f32 %v1207, %v1544
        %v1621 = vsub.f32 %v1305, %v1544
        %v1622 = vsub.f32 %v1403, %v1544
        %v1623 = vsub.f32 %v1501, %v1544
        %v1624 = vsub.f32 %v1209, %v1549
        %v1625 = vsub.f32 %v1307, %v1549
        %v1626 = vsub.f32 %v1405, %v1549
        %v1627 = vsub.f32 %v1503, %v1549
        %v1628 = vsub.f32 %v1212, %v1554
        %v1629 = vsub.f32 %v1310, %v1554
        %v1630 = vsub.f32 %v1408, %v1554
        %v1631 = vsub.f32 %v1506, %v1554
        %v1632 = vsub.f32 %v1214, %v1559
        %v1633 = vsub.f32 %v1312, %v1559
        %v1634 = vsub.f32 %v1410, %v1559
        %v1635 = vsub.f32 %v1508, %v1559
        %v1636 = vsub.f32 %v1217, %v1564
        %v1637 = vsub.f32 %v1315, %v1564
        %v1638 = vsub.f32 %v1413, %v1564
        %v1639 = vsub.f32 %v1511, %v1564
        %v1640 = vsub.f32 %v1219, %v1569
        %v1641 = vsub.f32 %v1317, %v1569
        %v1642 = vsub.f32 %v1415, %v1569
        %v1643 = vsub.f32 %v1513, %v1569
        %v1644 = vsub.f32 %v1222, %v1574
        %v1645 = vsub.f32 %v1320, %v1574
        %v1646 = vsub.f32 %v1418, %v1574
        %v1647 = vsub.f32 %v1516, %v1574
        %v1648 = vsub.f32 %v1224, %v1579
        %v1649 = vsub.f32 %v1322, %v1579
        %v1650 = vsub.f32 %v1420, %v1579
        %v1651 = vsub.f32 %v1518, %v1579
        %v1652 = vsub.f32 %v1227, %v1584
        %v1653 = vsub.f32 %v1325, %v1584
        %v1654 = vsub.f32 %v1423, %v1584
        %v1655 = vsub.f32 %v1521, %v1584
        %v1656 = vsub.f32 %v1229, %v1589
        %v1657 = vsub.f32 %v1327, %v1589
        %v1658 = vsub.f32 %v1425, %v1589
        %v1659 = vsub.f32 %v1523, %v1589
        %v1660 = vsub.f32 %v1232, %v1594
        %v1661 = vsub.f32 %v1330, %v1594
        %v1662 = vsub.f32 %v1428, %v1594
        %v1663 = vsub.f32 %v1526, %v1594
        %v1664 = vsub.f32 %v1234, %v1599
        %v1665 = vsub.f32 %v1332, %v1599
        %v1666 = vsub.f32 %v1430, %v1599
        %v1667 = vsub.f32 %v1528, %v1599
        %v1668 = vsub.f32 %v1237, %v1604
        %v1669 = vsub.f32 %v1335, %v1604
        %v1670 = vsub.f32 %v1433, %v1604
        %v1671 = vsub.f32 %v1531, %v1604
        %v1672 = vsub.f32 %v1239, %v1609
        %v1673 = vsub.f32 %v1337, %v1609
        %v1674 = vsub.f32 %v1435, %v1609
        %v1675 = vsub.f32 %v1533, %v1609
        %v1676 = vsub.f32 %v1242, %v1614
        %v1677 = vsub.f32 %v1340, %v1614
        %v1678 = vsub.f32 %v1438, %v1614
        %v1679 = vsub.f32 %v1536, %v1614
        %v1680 = vsub.f32 %v1244, %v1619
        %v1681 = vsub.f32 %v1342, %v1619
        %v1682 = vsub.f32 %v1440, %v1619
        %v1683 = vsub.f32 %v1538, %v1619
        %v1684 = vmul.f32 %v1620, 1.442695
        %v1685 = vpow.pop %v1684
        %v1686 = vmul.f32 %v1621, 1.442695
        %v1687 = vpow.pop %v1686
        %v1688 = vmul.f32 %v1622, 1.442695
        %v1689 = vpow.pop %v1688
        %v1690 = vmul.f32 %v1623, 1.442695
        %v1691 = vpow.pop %v1690
        %v1692 = vmul.f32 %v1624, 1.442695
        %v1693 = vpow.pop %v1692
        %v1694 = vmul.f32 %v1625, 1.442695
        %v1695 = vpow.pop %v1694
        %v1696 = vmul.f32 %v1626, 1.442695
        %v1697 = vpow.pop %v1696
        %v1698 = vmul.f32 %v1627, 1.442695
        %v1699 = vpow.pop %v1698
        %v1700 = vmul.f32 %v1628, 1.442695
        %v1701 = vpow.pop %v1700
        %v1702 = vmul.f32 %v1629, 1.442695
        %v1703 = vpow.pop %v1702
        %v1704 = vmul.f32 %v1630, 1.442695
        %v1705 = vpow.pop %v1704
        %v1706 = vmul.f32 %v1631, 1.442695
        %v1707 = vpow.pop %v1706
        %v1708 = vmul.f32 %v1632, 1.442695
        %v1709 = vpow.pop %v1708
        %v1710 = vmul.f32 %v1633, 1.442695
        %v1711 = vpow.pop %v1710
        %v1712 = vmul.f32 %v1634, 1.442695
        %v1713 = vpow.pop %v1712
        %v1714 = vmul.f32 %v1635, 1.442695
        %v1715 = vpow.pop %v1714
        %v1716 = vmul.f32 %v1636, 1.442695
        %v1717 = vpow.pop %v1716
        %v1718 = vmul.f32 %v1637, 1.442695
        %v1719 = vpow.pop %v1718
        %v1720 = vmul.f32 %v1638, 1.442695
        %v1721 = vpow.pop %v1720
        %v1722 = vmul.f32 %v1639, 1.442695
        %v1723 = vpow.pop %v1722
        %v1724 = vmul.f32 %v1640, 1.442695
        %v1725 = vpow.pop %v1724
        %v1726 = vmul.f32 %v1641, 1.442695
        %v1727 = vpow.pop %v1726
        %v1728 = vmul.f32 %v1642, 1.442695
        %v1729 = vpow.pop %v1728
        %v1730 = vmul.f32 %v1643, 1.442695
        %v1731 = vpow.pop %v1730
        %v1732 = vmul.f32 %v1644, 1.442695
        %v1733 = vpow.pop %v1732
        %v1734 = vmul.f32 %v1645, 1.442695
        %v1735 = vpow.pop %v1734
        %v1736 = vmul.f32 %v1646, 1.442695
        %v1737 = vpow.pop %v1736
        %v1738 = vmul.f32 %v1647, 1.442695
        %v1739 = vpow.pop %v1738
        %v1740 = vmul.f32 %v1648, 1.442695
        %v1741 = vpow.pop %v1740
        %v1742 = vmul.f32 %v1649, 1.442695
        %v1743 = vpow.pop %v1742
        %v1744 = vmul.f32 %v1650, 1.442695
        %v1745 = vpow.pop %v1744
        %v1746 = vmul.f32 %v1651, 1.442695
        %v1747 = vpow.pop %v1746
        %v1748 = vmul.f32 %v1652, 1.442695
        %v1749 = vpow.pop %v1748
        %v1750 = vmul.f32 %v1653, 1.442695
        %v1751 = vpow.pop %v1750
        %v1752 = vmul.f32 %v1654, 1.442695
        %v1753 = vpow.pop %v1752
        %v1754 = vmul.f32 %v1655, 1.442695
        %v1755 = vpow.pop %v1754
        %v1756 = vmul.f32 %v1656, 1.442695
        %v1757 = vpow.pop %v1756
        %v1758 = vmul.f32 %v1657, 1.442695
        %v1759 = vpow.pop %v1758
        %v1760 = vmul.f32 %v1658, 1.442695
        %v1761 = vpow.pop %v1760
        %v1762 = vmul.f32 %v1659, 1.442695
        %v1763 = vpow.pop %v1762
        %v1764 = vmul.f32 %v1660, 1.442695
        %v1765 = vpow.pop %v1764
        %v1766 = vmul.f32 %v1661, 1.442695
        %v1767 = vpow.pop %v1766
        %v1768 = vmul.f32 %v1662, 1.442695
        %v1769 = vpow.pop %v1768
        %v1770 = vmul.f32 %v1663, 1.442695
        %v1771 = vpow.pop %v1770
        %v1772 = vmul.f32 %v1664, 1.442695
        %v1773 = vpow.pop %v1772
        %v1774 = vmul.f32 %v1665, 1.442695
        %v1775 = vpow.pop %v1774
        %v1776 = vmul.f32 %v1666, 1.442695
        %v1777 = vpow.pop %v1776
        %v1778 = vmul.f32 %v1667, 1.442695
        %v1779 = vpow.pop %v1778
        %v1780 = vmul.f32 %v1668, 1.442695
        %v1781 = vpow.pop %v1780
        %v1782 = vmul.f32 %v1669, 1.442695
        %v1783 = vpow.pop %v1782
        %v1784 = vmul.f32 %v1670, 1.442695
        %v1785 = vpow.pop %v1784
        %v1786 = vmul.f32 %v1671, 1.442695
        %v1787 = vpow.pop %v1786
        %v1788 = vmul.f32 %v1672, 1.442695
        %v1789 = vpow.pop %v1788
        %v1790 = vmul.f32 %v1673, 1.442695
        %v1791 = vpow.pop %v1790
        %v1792 = vmul.f32 %v1674, 1.442695
        %v1793 = vpow.pop %v1792
        %v1794 = vmul.f32 %v1675, 1.442695
        %v1795 = vpow.pop %v1794
        %v1796 = vmul.f32 %v1676, 1.442695
        %v1797 = vpow.pop %v1796
        %v1798 = vmul.f32 %v1677, 1.442695
        %v1799 = vpow.pop %v1798
        %v1800 = vmul.f32 %v1678, 1.442695
        %v1801 = vpow.pop %v1800
        %v1802 = vmul.f32 %v1679, 1.442695
        %v1803 = vpow.pop %v1802
        %v1804 = vmul.f32 %v1680, 1.442695
        %v1805 = vpow.pop %v1804
        %v1806 = vmul.f32 %v1681, 1.442695
        %v1807 = vpow.pop %v1806
        %v1808 = vmul.f32 %v1682, 1.442695
        %v1809 = vpow.pop %v1808
        %v1810 = vmul.f32 %v1683, 1.442695
        %v1811 = vpow.pop %v1810
        %v1812 = vadd.f32 %v1685, %v1687
        %v1813 = vadd.f32 %v1812, %v1689
        %v1814 = vadd.f32 %v1813, %v1691
        %1815 = vadd.xlane.f32.xlu0 %v1814
        %v1816 = vpop.xlane.xlu0 %1815
        %v1817 = vadd.f32 %v1693, %v1695
        %v1818 = vadd.f32 %v1817, %v1697
        %v1819 = vadd.f32 %v1818, %v1699
        %1820 = vadd.xlane.f32.xlu0 %v1819
        %v1821 = vpop.xlane.xlu0 %1820
        %v1822 = vadd.f32 %v1701, %v1703
        %v1823 = vadd.f32 %v1822, %v1705
        %v1824 = vadd.f32 %v1823, %v1707
        %1825 = vadd.xlane.f32.xlu0 %v1824
        %v1826 = vpop.xlane.xlu0 %1825
        %v1827 = vadd.f32 %v1709, %v1711
        %v1828 = vadd.f32 %v1827, %v1713
        %v1829 = vadd.f32 %v1828, %v1715
        %1830 = vadd.xlane.f32.xlu0 %v1829
        %v1831 = vpop.xlane.xlu0 %1830
        %v1832 = vadd.f32 %v1717, %v1719
        %v1833 = vadd.f32 %v1832, %v1721
        %v1834 = vadd.f32 %v1833, %v1723
        %1835 = vadd.xlane.f32.xlu0 %v1834
        %v1836 = vpop.xlane.xlu0 %1835
        %v1837 = vadd.f32 %v1725, %v1727
        %v1838 = vadd.f32 %v1837, %v1729
        %v1839 = vadd.f32 %v1838, %v1731
        %1840 = vadd.xlane.f32.xlu0 %v1839
        %v1841 = vpop.xlane.xlu0 %1840
        %v1842 = vadd.f32 %v1733, %v1735
        %v1843 = vadd.f32 %v1842, %v1737
        %v1844 = vadd.f32 %v1843, %v1739
        %1845 = vadd.xlane.f32.xlu0 %v1844
        %v1846 = vpop.xlane.xlu0 %1845
        %v1847 = vadd.f32 %v1741, %v1743
        %v1848 = vadd.f32 %v1847, %v1745
        %v1849 = vadd.f32 %v1848, %v1747
        %1850 = vadd.xlane.f32.xlu0 %v1849
        %v1851 = vpop.xlane.xlu0 %1850
        %v1852 = vadd.f32 %v1749, %v1751
        %v1853 = vadd.f32 %v1852, %v1753
        %v1854 = vadd.f32 %v1853, %v1755
        %1855 = vadd.xlane.f32.xlu0 %v1854
        %v1856 = vpop.xlane.xlu0 %1855
        %v1857 = vadd.f32 %v1757, %v1759
        %v1858 = vadd.f32 %v1857, %v1761
        %v1859 = vadd.f32 %v1858, %v1763
        %1860 = vadd.xlane.f32.xlu0 %v1859
        %v1861 = vpop.xlane.xlu0 %1860
        %v1862 = vadd.f32 %v1765, %v1767
        %v1863 = vadd.f32 %v1862, %v1769
        %v1864 = vadd.f32 %v1863, %v1771
        %1865 = vadd.xlane.f32.xlu0 %v1864
        %v1866 = vpop.xlane.xlu0 %1865
        %v1867 = vadd.f32 %v1773, %v1775
        %v1868 = vadd.f32 %v1867, %v1777
        %v1869 = vadd.f32 %v1868, %v1779
        %1870 = vadd.xlane.f32.xlu0 %v1869
        %v1871 = vpop.xlane.xlu0 %1870
        %v1872 = vadd.f32 %v1781, %v1783
        %v1873 = vadd.f32 %v1872, %v1785
        %v1874 = vadd.f32 %v1873, %v1787
        %1875 = vadd.xlane.f32.xlu0 %v1874
        %v1876 = vpop.xlane.xlu0 %1875
        %v1877 = vadd.f32 %v1789, %v1791
        %v1878 = vadd.f32 %v1877, %v1793
        %v1879 = vadd.f32 %v1878, %v1795
        %1880 = vadd.xlane.f32.xlu0 %v1879
        %v1881 = vpop.xlane.xlu0 %1880
        %v1882 = vadd.f32 %v1797, %v1799
        %v1883 = vadd.f32 %v1882, %v1801
        %v1884 = vadd.f32 %v1883, %v1803
        %1885 = vadd.xlane.f32.xlu0 %v1884
        %v1886 = vpop.xlane.xlu0 %1885
        %v1887 = vadd.f32 %v1805, %v1807
        %v1888 = vadd.f32 %v1887, %v1809
        %v1889 = vadd.f32 %v1888, %v1811
        %1890 = vadd.xlane.f32.xlu0 %v1889
        %v1891 = vpop.xlane.xlu0 %1890
        %v1892 = vrcp.pop %v1816
        %v1893 = vmul.f32 %v1816, %v1892
        %v1894 = vsub.f32 1.0, %v1893
        %v1895 = vmul.f32 %v1892, %v1894
        %v1896 = vadd.f32 %v1892, %v1895
        %vm1897 = vweird.f32 %v1816
        %vm1898 = vweird.f32 %v1892
        %vm1899 = vmor %vm1897, %vm1898
        %v1900 = vsel %vm1899, %v1892, %v1896
        %v1901 = vand.u32 2147483647, %v1816
        %vm1902 = vcmp.eq.f32.partialorder %v1901, 8.507059e+37
        %v1903 = vand.u32 %v1816, 2147483648
        %v1904 = vor.u32 1.1754944e-38, %v1903
        %v1905 = vsel %vm1902, %v1904, %v1900
        %v1906 = vrcp.pop %v1821
        %v1907 = vmul.f32 %v1821, %v1906
        %v1908 = vsub.f32 1.0, %v1907
        %v1909 = vmul.f32 %v1906, %v1908
        %v1910 = vadd.f32 %v1906, %v1909
        %vm1911 = vweird.f32 %v1821
        %vm1912 = vweird.f32 %v1906
        %vm1913 = vmor %vm1911, %vm1912
        %v1914 = vsel %vm1913, %v1906, %v1910
        %v1915 = vand.u32 2147483647, %v1821
        %vm1916 = vcmp.eq.f32.partialorder %v1915, 8.507059e+37
        %v1917 = vand.u32 %v1821, 2147483648
        %v1918 = vor.u32 1.1754944e-38, %v1917
        %v1919 = vsel %vm1916, %v1918, %v1914
        %v1920 = vrcp.pop %v1826
        %v1921 = vmul.f32 %v1826, %v1920
        %v1922 = vsub.f32 1.0, %v1921
        %v1923 = vmul.f32 %v1920, %v1922
        %v1924 = vadd.f32 %v1920, %v1923
        %vm1925 = vweird.f32 %v1826
        %vm1926 = vweird.f32 %v1920
        %vm1927 = vmor %vm1925, %vm1926
        %v1928 = vsel %vm1927, %v1920, %v1924
        %v1929 = vand.u32 2147483647, %v1826
        %vm1930 = vcmp.eq.f32.partialorder %v1929, 8.507059e+37
        %v1931 = vand.u32 %v1826, 2147483648
        %v1932 = vor.u32 1.1754944e-38, %v1931
        %v1933 = vsel %vm1930, %v1932, %v1928
        %v1934 = vrcp.pop %v1831
        %v1935 = vmul.f32 %v1831, %v1934
        %v1936 = vsub.f32 1.0, %v1935
        %v1937 = vmul.f32 %v1934, %v1936
        %v1938 = vadd.f32 %v1934, %v1937
        %vm1939 = vweird.f32 %v1831
        %vm1940 = vweird.f32 %v1934
        %vm1941 = vmor %vm1939, %vm1940
        %v1942 = vsel %vm1941, %v1934, %v1938
        %v1943 = vand.u32 2147483647, %v1831
        %vm1944 = vcmp.eq.f32.partialorder %v1943, 8.507059e+37
        %v1945 = vand.u32 %v1831, 2147483648
        %v1946 = vor.u32 1.1754944e-38, %v1945
        %v1947 = vsel %vm1944, %v1946, %v1942
        %v1948 = vrcp.pop %v1836
        %v1949 = vmul.f32 %v1836, %v1948
        %v1950 = vsub.f32 1.0, %v1949
        %v1951 = vmul.f32 %v1948, %v1950
        %v1952 = vadd.f32 %v1948, %v1951
        %vm1953 = vweird.f32 %v1836
        %vm1954 = vweird.f32 %v1948
        %vm1955 = vmor %vm1953, %vm1954
        %v1956 = vsel %vm1955, %v1948, %v1952
        %v1957 = vand.u32 2147483647, %v1836
        %vm1958 = vcmp.eq.f32.partialorder %v1957, 8.507059e+37
        %v1959 = vand.u32 %v1836, 2147483648
        %v1960 = vor.u32 1.1754944e-38, %v1959
        %v1961 = vsel %vm1958, %v1960, %v1956
        %v1962 = vrcp.pop %v1841
        %v1963 = vmul.f32 %v1841, %v1962
        %v1964 = vsub.f32 1.0, %v1963
        %v1965 = vmul.f32 %v1962, %v1964
        %v1966 = vadd.f32 %v1962, %v1965
        %vm1967 = vweird.f32 %v1841
        %vm1968 = vweird.f32 %v1962
        %vm1969 = vmor %vm1967, %vm1968
        %v1970 = vsel %vm1969, %v1962, %v1966
        %v1971 = vand.u32 2147483647, %v1841
        %vm1972 = vcmp.eq.f32.partialorder %v1971, 8.507059e+37
        %v1973 = vand.u32 %v1841, 2147483648
        %v1974 = vor.u32 1.1754944e-38, %v1973
        %v1975 = vsel %vm1972, %v1974, %v1970
        %v1976 = vrcp.pop %v1846
        %v1977 = vmul.f32 %v1846, %v1976
        %v1978 = vsub.f32 1.0, %v1977
        %v1979 = vmul.f32 %v1976, %v1978
        %v1980 = vadd.f32 %v1976, %v1979
        %vm1981 = vweird.f32 %v1846
        %vm1982 = vweird.f32 %v1976
        %vm1983 = vmor %vm1981, %vm1982
        %v1984 = vsel %vm1983, %v1976, %v1980
        %v1985 = vand.u32 2147483647, %v1846
        %vm1986 = vcmp.eq.f32.partialorder %v1985, 8.507059e+37
        %v1987 = vand.u32 %v1846, 2147483648
        %v1988 = vor.u32 1.1754944e-38, %v1987
        %v1989 = vsel %vm1986, %v1988, %v1984
        %v1990 = vrcp.pop %v1851
        %v1991 = vmul.f32 %v1851, %v1990
        %v1992 = vsub.f32 1.0, %v1991
        %v1993 = vmul.f32 %v1990, %v1992
        %v1994 = vadd.f32 %v1990, %v1993
        %vm1995 = vweird.f32 %v1851
        %vm1996 = vweird.f32 %v1990
        %vm1997 = vmor %vm1995, %vm1996
        %v1998 = vsel %vm1997, %v1990, %v1994
        %v1999 = vand.u32 2147483647, %v1851
        %vm2000 = vcmp.eq.f32.partialorder %v1999, 8.507059e+37
        %v2001 = vand.u32 %v1851, 2147483648
        %v2002 = vor.u32 1.1754944e-38, %v2001
        %v2003 = vsel %vm2000, %v2002, %v1998
        %v2004 = vrcp.pop %v1856
        %v2005 = vmul.f32 %v1856, %v2004
        %v2006 = vsub.f32 1.0, %v2005
        %v2007 = vmul.f32 %v2004, %v2006
        %v2008 = vadd.f32 %v2004, %v2007
        %vm2009 = vweird.f32 %v1856
        %vm2010 = vweird.f32 %v2004
        %vm2011 = vmor %vm2009, %vm2010
        %v2012 = vsel %vm2011, %v2004, %v2008
        %v2013 = vand.u32 2147483647, %v1856
        %vm2014 = vcmp.eq.f32.partialorder %v2013, 8.507059e+37
        %v2015 = vand.u32 %v1856, 2147483648
        %v2016 = vor.u32 1.1754944e-38, %v2015
        %v2017 = vsel %vm2014, %v2016, %v2012
        %v2018 = vrcp.pop %v1861
        %v2019 = vmul.f32 %v1861, %v2018
        %v2020 = vsub.f32 1.0, %v2019
        %v2021 = vmul.f32 %v2018, %v2020
        %v2022 = vadd.f32 %v2018, %v2021
        %vm2023 = vweird.f32 %v1861
        %vm2024 = vweird.f32 %v2018
        %vm2025 = vmor %vm2023, %vm2024
        %v2026 = vsel %vm2025, %v2018, %v2022
        %v2027 = vand.u32 2147483647, %v1861
        %vm2028 = vcmp.eq.f32.partialorder %v2027, 8.507059e+37
        %v2029 = vand.u32 %v1861, 2147483648
        %v2030 = vor.u32 1.1754944e-38, %v2029
        %v2031 = vsel %vm2028, %v2030, %v2026
        %v2032 = vrcp.pop %v1866
        %v2033 = vmul.f32 %v1866, %v2032
        %v2034 = vsub.f32 1.0, %v2033
        %v2035 = vmul.f32 %v2032, %v2034
        %v2036 = vadd.f32 %v2032, %v2035
        %vm2037 = vweird.f32 %v1866
        %vm2038 = vweird.f32 %v2032
        %vm2039 = vmor %vm2037, %vm2038
        %v2040 = vsel %vm2039, %v2032, %v2036
        %v2041 = vand.u32 2147483647, %v1866
        %vm2042 = vcmp.eq.f32.partialorder %v2041, 8.507059e+37
        %v2043 = vand.u32 %v1866, 2147483648
        %v2044 = vor.u32 1.1754944e-38, %v2043
        %v2045 = vsel %vm2042, %v2044, %v2040
        %v2046 = vrcp.pop %v1871
        %v2047 = vmul.f32 %v1871, %v2046
        %v2048 = vsub.f32 1.0, %v2047
        %v2049 = vmul.f32 %v2046, %v2048
        %v2050 = vadd.f32 %v2046, %v2049
        %vm2051 = vweird.f32 %v1871
        %vm2052 = vweird.f32 %v2046
        %vm2053 = vmor %vm2051, %vm2052
        %v2054 = vsel %vm2053, %v2046, %v2050
        %v2055 = vand.u32 2147483647, %v1871
        %vm2056 = vcmp.eq.f32.partialorder %v2055, 8.507059e+37
        %v2057 = vand.u32 %v1871, 2147483648
        %v2058 = vor.u32 1.1754944e-38, %v2057
        %v2059 = vsel %vm2056, %v2058, %v2054
        %v2060 = vrcp.pop %v1876
        %v2061 = vmul.f32 %v1876, %v2060
        %v2062 = vsub.f32 1.0, %v2061
        %v2063 = vmul.f32 %v2060, %v2062
        %v2064 = vadd.f32 %v2060, %v2063
        %vm2065 = vweird.f32 %v1876
        %vm2066 = vweird.f32 %v2060
        %vm2067 = vmor %vm2065, %vm2066
        %v2068 = vsel %vm2067, %v2060, %v2064
        %v2069 = vand.u32 2147483647, %v1876
        %vm2070 = vcmp.eq.f32.partialorder %v2069, 8.507059e+37
        %v2071 = vand.u32 %v1876, 2147483648
        %v2072 = vor.u32 1.1754944e-38, %v2071
        %v2073 = vsel %vm2070, %v2072, %v2068
        %v2074 = vrcp.pop %v1881
        %v2075 = vmul.f32 %v1881, %v2074
        %v2076 = vsub.f32 1.0, %v2075
        %v2077 = vmul.f32 %v2074, %v2076
        %v2078 = vadd.f32 %v2074, %v2077
        %vm2079 = vweird.f32 %v1881
        %vm2080 = vweird.f32 %v2074
        %vm2081 = vmor %vm2079, %vm2080
        %v2082 = vsel %vm2081, %v2074, %v2078
        %v2083 = vand.u32 2147483647, %v1881
        %vm2084 = vcmp.eq.f32.partialorder %v2083, 8.507059e+37
        %v2085 = vand.u32 %v1881, 2147483648
        %v2086 = vor.u32 1.1754944e-38, %v2085
        %v2087 = vsel %vm2084, %v2086, %v2082
        %v2088 = vrcp.pop %v1886
        %v2089 = vmul.f32 %v1886, %v2088
        %v2090 = vsub.f32 1.0, %v2089
        %v2091 = vmul.f32 %v2088, %v2090
        %v2092 = vadd.f32 %v2088, %v2091
        %vm2093 = vweird.f32 %v1886
        %vm2094 = vweird.f32 %v2088
        %vm2095 = vmor %vm2093, %vm2094
        %v2096 = vsel %vm2095, %v2088, %v2092
        %v2097 = vand.u32 2147483647, %v1886
        %vm2098 = vcmp.eq.f32.partialorder %v2097, 8.507059e+37
        %v2099 = vand.u32 %v1886, 2147483648
        %v2100 = vor.u32 1.1754944e-38, %v2099
        %v2101 = vsel %vm2098, %v2100, %v2096
        %v2102 = vrcp.pop %v1891
        %v2103 = vmul.f32 %v1891, %v2102
        %v2104 = vsub.f32 1.0, %v2103
        %v2105 = vmul.f32 %v2102, %v2104
        %v2106 = vadd.f32 %v2102, %v2105
        %vm2107 = vweird.f32 %v1891
        %vm2108 = vweird.f32 %v2102
        %vm2109 = vmor %vm2107, %vm2108
        %v2110 = vsel %vm2109, %v2102, %v2106
        %v2111 = vand.u32 2147483647, %v1891
        %vm2112 = vcmp.eq.f32.partialorder %v2111, 8.507059e+37
        %v2113 = vand.u32 %v1891, 2147483648
        %v2114 = vor.u32 1.1754944e-38, %v2113
        %v2115 = vsel %vm2112, %v2114, %v2110
        %v2116 = vmul.f32 %v1685, %v1905
        %v2117 = vmul.f32 %v1687, %v1905
        %v2118 = vmul.f32 %v1689, %v1905
        %v2119 = vmul.f32 %v1691, %v1905
        %v2120 = vmul.f32 %v1693, %v1919
        %v2121 = vmul.f32 %v1695, %v1919
        %v2122 = vmul.f32 %v1697, %v1919
        %v2123 = vmul.f32 %v1699, %v1919
        %v2124 = vmul.f32 %v1701, %v1933
        %v2125 = vmul.f32 %v1703, %v1933
        %v2126 = vmul.f32 %v1705, %v1933
        %v2127 = vmul.f32 %v1707, %v1933
        %v2128 = vmul.f32 %v1709, %v1947
        %v2129 = vmul.f32 %v1711, %v1947
        %v2130 = vmul.f32 %v1713, %v1947
        %v2131 = vmul.f32 %v1715, %v1947
        %v2132 = vmul.f32 %v1717, %v1961
        %v2133 = vmul.f32 %v1719, %v1961
        %v2134 = vmul.f32 %v1721, %v1961
        %v2135 = vmul.f32 %v1723, %v1961
        %v2136 = vmul.f32 %v1725, %v1975
        %v2137 = vmul.f32 %v1727, %v1975
        %v2138 = vmul.f32 %v1729, %v1975
        %v2139 = vmul.f32 %v1731, %v1975
        %v2140 = vmul.f32 %v1733, %v1989
        %v2141 = vmul.f32 %v1735, %v1989
        %v2142 = vmul.f32 %v1737, %v1989
        %v2143 = vmul.f32 %v1739, %v1989
        %v2144 = vmul.f32 %v1741, %v2003
        %v2145 = vmul.f32 %v1743, %v2003
        %v2146 = vmul.f32 %v1745, %v2003
        %v2147 = vmul.f32 %v1747, %v2003
        %v2148 = vmul.f32 %v1749, %v2017
        %v2149 = vmul.f32 %v1751, %v2017
        %v2150 = vmul.f32 %v1753, %v2017
        %v2151 = vmul.f32 %v1755, %v2017
        %v2152 = vmul.f32 %v1757, %v2031
        %v2153 = vmul.f32 %v1759, %v2031
        %v2154 = vmul.f32 %v1761, %v2031
        %v2155 = vmul.f32 %v1763, %v2031
        %v2156 = vmul.f32 %v1765, %v2045
        %v2157 = vmul.f32 %v1767, %v2045
        %v2158 = vmul.f32 %v1769, %v2045
        %v2159 = vmul.f32 %v1771, %v2045
        %v2160 = vmul.f32 %v1773, %v2059
        %v2161 = vmul.f32 %v1775, %v2059
        %v2162 = vmul.f32 %v1777, %v2059
        %v2163 = vmul.f32 %v1779, %v2059
        %v2164 = vmul.f32 %v1781, %v2073
        %v2165 = vmul.f32 %v1783, %v2073
        %v2166 = vmul.f32 %v1785, %v2073
        %v2167 = vmul.f32 %v1787, %v2073
        %v2168 = vmul.f32 %v1789, %v2087
        %v2169 = vmul.f32 %v1791, %v2087
        %v2170 = vmul.f32 %v1793, %v2087
        %v2171 = vmul.f32 %v1795, %v2087
        %v2172 = vmul.f32 %v1797, %v2101
        %v2173 = vmul.f32 %v1799, %v2101
        %v2174 = vmul.f32 %v1801, %v2101
        %v2175 = vmul.f32 %v1803, %v2101
        %v2176 = vmul.f32 %v1805, %v2115
        %v2177 = vmul.f32 %v1807, %v2115
        %v2178 = vmul.f32 %v1809, %v2115
        %v2179 = vmul.f32 %v1811, %v2115
        %2180 = vst [vmem:[%s237] sm:$0xff] %v2116
        %2181 = vst [vmem:[%s237 + $0x8] sm:$0xff] %v2117
        %2182 = vst [vmem:[%s237 + $0x10] sm:$0xff] %v2118
        %2183 = vst [vmem:[%s237 + $0x18] sm:$0xff] %v2119
        %2184 = vst [vmem:[%s237 + $0x20] sm:$0xff] %v2120
        %2185 = vst [vmem:[%s237 + $0x28] sm:$0xff] %v2121
        %2186 = vst [vmem:[%s237 + $0x30] sm:$0xff] %v2122
        %2187 = vst [vmem:[%s237 + $0x38] sm:$0xff] %v2123
        %2188 = vst [vmem:[%s237 + $0x40] sm:$0xff] %v2124
        %2189 = vst [vmem:[%s237 + $0x48] sm:$0xff] %v2125
        %2190 = vst [vmem:[%s237 + $0x50] sm:$0xff] %v2126
        %2191 = vst [vmem:[%s237 + $0x58] sm:$0xff] %v2127
        %2192 = vst [vmem:[%s237 + $0x60] sm:$0xff] %v2128
        %2193 = vst [vmem:[%s237 + $0x68] sm:$0xff] %v2129
        %2194 = vst [vmem:[%s237 + $0x70] sm:$0xff] %v2130
        %2195 = vst [vmem:[%s237 + $0x78] sm:$0xff] %v2131
        %2196 = vst [vmem:[%s237 + $0x80] sm:$0xff] %v2132
        %2197 = vst [vmem:[%s237 + $0x88] sm:$0xff] %v2133
        %2198 = vst [vmem:[%s237 + $0x90] sm:$0xff] %v2134
        %2199 = vst [vmem:[%s237 + $0x98] sm:$0xff] %v2135
        %2200 = vst [vmem:[%s237 + $0xa0] sm:$0xff] %v2136
        %2201 = vst [vmem:[%s237 + $0xa8] sm:$0xff] %v2137
        %2202 = vst [vmem:[%s237 + $0xb0] sm:$0xff] %v2138
        %2203 = vst [vmem:[%s237 + $0xb8] sm:$0xff] %v2139
        %2204 = vst [vmem:[%s237 + $0xc0] sm:$0xff] %v2140
        %2205 = vst [vmem:[%s237 + $0xc8] sm:$0xff] %v2141
        %2206 = vst [vmem:[%s237 + $0xd0] sm:$0xff] %v2142
        %2207 = vst [vmem:[%s237 + $0xd8] sm:$0xff] %v2143
        %2208 = vst [vmem:[%s237 + $0xe0] sm:$0xff] %v2144
        %2209 = vst [vmem:[%s237 + $0xe8] sm:$0xff] %v2145
        %2210 = vst [vmem:[%s237 + $0xf0] sm:$0xff] %v2146
        %2211 = vst [vmem:[%s237 + $0xf8] sm:$0xff] %v2147
        %2212 = vst [vmem:[%s237 + $0x100] sm:$0xff] %v2148
        %2213 = vst [vmem:[%s237 + $0x108] sm:$0xff] %v2149
        %2214 = vst [vmem:[%s237 + $0x110] sm:$0xff] %v2150
        %2215 = vst [vmem:[%s237 + $0x118] sm:$0xff] %v2151
        %2216 = vst [vmem:[%s237 + $0x120] sm:$0xff] %v2152
        %2217 = vst [vmem:[%s237 + $0x128] sm:$0xff] %v2153
        %2218 = vst [vmem:[%s237 + $0x130] sm:$0xff] %v2154
        %2219 = vst [vmem:[%s237 + $0x138] sm:$0xff] %v2155
        %2220 = vst [vmem:[%s237 + $0x140] sm:$0xff] %v2156
        %2221 = vst [vmem:[%s237 + $0x148] sm:$0xff] %v2157
        %2222 = vst [vmem:[%s237 + $0x150] sm:$0xff] %v2158
        %2223 = vst [vmem:[%s237 + $0x158] sm:$0xff] %v2159
        %2224 = vst [vmem:[%s237 + $0x160] sm:$0xff] %v2160
        %2225 = vst [vmem:[%s237 + $0x168] sm:$0xff] %v2161
        %2226 = vst [vmem:[%s237 + $0x170] sm:$0xff] %v2162
        %2227 = vst [vmem:[%s237 + $0x178] sm:$0xff] %v2163
        %2228 = vst [vmem:[%s237 + $0x180] sm:$0xff] %v2164
        %2229 = vst [vmem:[%s237 + $0x188] sm:$0xff] %v2165
        %2230 = vst [vmem:[%s237 + $0x190] sm:$0xff] %v2166
        %2231 = vst [vmem:[%s237 + $0x198] sm:$0xff] %v2167
        %2232 = vst [vmem:[%s237 + $0x1a0] sm:$0xff] %v2168
        %2233 = vst [vmem:[%s237 + $0x1a8] sm:$0xff] %v2169
        %2234 = vst [vmem:[%s237 + $0x1b0] sm:$0xff] %v2170
        %2235 = vst [vmem:[%s237 + $0x1b8] sm:$0xff] %v2171
        %2236 = vst [vmem:[%s237 + $0x1c0] sm:$0xff] %v2172
        %2237 = vst [vmem:[%s237 + $0x1c8] sm:$0xff] %v2173
        %2238 = vst [vmem:[%s237 + $0x1d0] sm:$0xff] %v2174
        %2239 = vst [vmem:[%s237 + $0x1d8] sm:$0xff] %v2175
        %2240 = vst [vmem:[%s237 + $0x1e0] sm:$0xff] %v2176
        %2241 = vst [vmem:[%s237 + $0x1e8] sm:$0xff] %v2177
        %2242 = vst [vmem:[%s237 + $0x1f0] sm:$0xff] %v2178
        %2243 = vst [vmem:[%s237 + $0x1f8] sm:$0xff] %v2179
        %s2244 = sand.u32 %s138, 1
        %s2245 = scalar_lea.sflag [#allocation4], %s2244
        %s2246 = sand.u32 %s138, 1
        %s2247 = smul.addr %s2246, 512
        %s2248 = scalar_lea.vmem [#allocation5], %s2247
        // Predicated region
        $region45: #{tpu_custom_call.1} parent=39 // pred_check
          %p2249 = pneg %p148
        $region46: #{tpu_custom_call.1} parent=39 // pred_check_branch
          %2251 = sbr.rel (%p2249) target = $region48
        $region47: #{tpu_custom_call.1} parent=39 // pred_region
          %s2252 = smul.u32 16, %s20
          %2254 = vsyncadd %s2245, 0
          %s2255 = smul.addr %s2252, 4
          %s2256 = smul.addr %s2255, 8
          %s2257 = scalar_lea.hbm %s5, %s2256
          %s2258 = sshll.u32 %s2248, 4
          %s2259 = int_to_ptr.vmem [resolvable:$true] %s2258
          %s2260 = sshll.u32 %s2257, 4
          %s2261 = int_to_ptr.hbm [resolvable:$true] %s2260
          %2266 = dma.vmem_to_hbm [thread:$0]  %s2259, 8192, %s2261, %s2245, 512, 512, 32
        $region48: #{tpu_custom_call.1} parent=39 // pred_fallthru
          _
      $region40: #{tpu_custom_call.1} parent=5 // pred_fallthru
        _
      %p2267 = scmp.le.s32.totalorder 2, %s15
      // Predicated region
      $region49: #{tpu_custom_call.1} parent=5 // pred_check
        %p2268 = pneg %p2267
      $region50: #{tpu_custom_call.1} parent=5 // pred_check_branch
        %2270 = sbr.rel (%p2268) target = $region52
      $region51: #{tpu_custom_call.1} parent=5 // pred_region
        %s2271 = ssub.s32 %s15, 2
        // Predicated region
        $region53: #{tpu_custom_call.1} parent=51 // pred_check
          %p2272 = pneg %p154
        $region54: #{tpu_custom_call.1} parent=51 // pred_check_branch
          %2274 = sbr.rel (%p2272) target = $region56
        $region55: #{tpu_custom_call.1} parent=51 // pred_region
          %s2275 = sand.u32 %s139, 1
          %s2276 = scalar_lea.sflag [#allocation4], %s2275
          %s2277 = sand.u32 %s139, 1
          %s2278 = smul.addr %s2277, 512
          %s2279 = scalar_lea.vmem [#allocation5], %s2278
          %2281 = dma.done %s2276, 8192
        $region56: #{tpu_custom_call.1} parent=51 // pred_fallthru
          _
      $region52: #{tpu_custom_call.1} parent=5 // pred_fallthru
        _
    $region6: #{tpu_custom_call.1} parent=1 // loop_footer
      %s19 = sadd.s32 1, %s15
    $region7: #{tpu_custom_call.1} parent=1 // loop_footer_branch
      %14 = sbr.rel target = $region3
    $region8: #{tpu_custom_call.1} parent=1 // loop_exit
      _
    %2282 = vsyncpa [#allocation3], 1
    %s2283 = scalar_lea.sflag [#allocation3], 1
    %2284 = vsyncpa %s2283, 1
    %2285 = vsyncpa [#allocation4], 1
    %s2286 = scalar_lea.sflag [#allocation4], 1
    %2287 = vsyncpa %s2286, 1

</llo_original>
